<compile_context>
chip_gen: v6e
topology: v6e:2x2x1
jax: 0.10.0
libtpu: 0.0.40
codegen_flags: <defaults>
</compile_context>

<pallas_src>
import functools
import math

import jax
import jax.numpy as jnp
from jax.experimental import pallas as pl
from jax.experimental.pallas import tpu as pltpu


def _block_kernel(x_ref, ln_w_ref, ln_b_ref, qkv_w_ref, qkv_b_ref,
                  proj_w_ref, proj_b_ref, o_ref, merge_ref, *, num_heads, eps):
    # x_ref: (Bt, N, C) tile holding Bt attention windows.
    Bt, N, C = x_ref.shape
    hd = C // num_heads
    M = Bt * N

    # --- LayerNorm over channels (two-pass variance, f32) ---
    x = x_ref[...].reshape(M, C).astype(jnp.float32)
    mean = jnp.mean(x, axis=-1, keepdims=True)
    xc = x - mean
    var = jnp.mean(xc * xc, axis=-1, keepdims=True)
    xn = xc * jax.lax.rsqrt(var + eps)
    xn = xn * ln_w_ref[...] + ln_b_ref[...]                          # (M, C) f32

    # --- fused qkv projection (attention scale pre-folded into q cols) ---
    qkv = jnp.dot(xn.astype(jnp.bfloat16), qkv_w_ref[...],
                  preferred_element_type=jnp.float32) + qkv_b_ref[...]   # (M, 3C)

    # --- build head-batched q/k/v: (num_heads*Bt, N, hd), batch idx = h*Bt+b ---
    def head_batched(base):
        parts = [qkv[:, base + h * hd: base + (h + 1) * hd].reshape(Bt, N, hd)
                 for h in range(num_heads)]
        return parts[0] if num_heads == 1 else jnp.concatenate(parts, axis=0)

    q = head_batched(0).astype(jnp.bfloat16)
    k = head_batched(C).astype(jnp.bfloat16)
    v = head_batched(2 * C).astype(jnp.bfloat16)

    # --- attention: one batched matmul per stage (no explicit k transpose) ---
    s = jax.lax.dot_general(q, k, (((2,), (2,)), ((0,), (0,))),
                            preferred_element_type=jnp.float32)     # (hB, N, N)
    s = s - jnp.max(s, axis=-1, keepdims=True)
    p = jnp.exp(s)
    inv_l = pl.reciprocal(jnp.sum(p, axis=-1, keepdims=True), approx=True)

    o = jax.lax.dot_general(p.astype(jnp.bfloat16), v,
                            (((2,), (1,)), ((0,), (0,))),
                            preferred_element_type=jnp.float32)     # (hB, N, hd)
    o = o * inv_l                                                    # normalize

    # --- merge heads back to (M, C) via the VMEM scratch (lane-sliced stores) ---
    for h in range(num_heads):
        merge_ref[:, h * hd:(h + 1) * hd] = o[h * Bt:(h + 1) * Bt].reshape(M, hd)

    # --- single output projection with full K=C contraction ---
    out = jnp.dot(merge_ref[...].astype(jnp.bfloat16), proj_w_ref[...],
                  preferred_element_type=jnp.float32) + proj_b_ref[...]
    o_ref[...] = out.reshape(Bt, N, C).astype(o_ref.dtype)


def _device_config():
    """Per-generation tiling / VMEM configuration."""
    kind = ""
    try:
        kind = jax.devices()[0].device_kind.lower()
    except Exception:
        pass
    if "v7" in kind or "7x" in kind:
        # v7x: 64 MiB physical VMEM, 2 TensorCores -> keep the grid even (>=2)
        # so dimension_semantics=("parallel",) shards windows across cores, and
        # leave headroom under the physical VMEM size.
        return {"budget": 10 << 20, "cap": 32, "vmem_limit": 48 << 20,
                "even_grid": True}
    # v5e / v6e: 128 MiB VMEM, single TensorCore -> maximize per-step tile.
    return {"budget": 14 << 20, "cap": 64, "vmem_limit": 64 << 20,
            "even_grid": False}


def _per_step_bytes(bt, N, C, num_heads):
    """Conservative per-step VMEM estimate: pipeline buffers + intermediates,
    accounting for lane padding to 128."""
    pad = lambda d: -(-d // 128) * 128
    M = bt * N
    hd = C // num_heads
    hB = num_heads * bt
    b = 0
    b += 2 * 2 * M * pad(C) * 4          # double-buffered input + output blocks
    b += 2 * M * pad(C) * 4              # x, xn (f32)
    b += M * pad(3 * C) * 4              # qkv (f32)
    b += 3 * hB * N * pad(hd) * 2        # head-batched q/k/v (bf16)
    b += 2 * hB * N * pad(N) * 4         # scores + exp(scores) (f32)
    b += hB * N * pad(N) * 2             # bf16 copy of p for attn@v
    b += hB * N * pad(hd) * 4            # attention output (f32)
    b += 3 * M * pad(C) * 4              # merge scratch + projected out (f32)
    return b


def _pick_windows_per_step(B, N, C, num_heads, cfg):
    """Largest divisor of B fitting the budget (even grid preferred on v7x)."""
    divisors = [d for d in range(1, B + 1) if B % d == 0]
    fits = [d for d in divisors
            if d <= cfg["cap"]
            and _per_step_bytes(d, N, C, num_heads) <= cfg["budget"]]
    if not fits:
        fits = [1]
    if cfg["even_grid"] and B >= 2:
        even = [d for d in fits if (B // d) % 2 == 0]
        if even:
            return max(even)
    return max(fits)


def window_transformer_block_2d(x, params, *, num_heads):
    """x: (B, C, H, W) float32.  Returns (B, C, H, W)."""
    B, C, H, W = x.shape
    assert C % num_heads == 0, "dim must be divisible by num_heads"
    N = H * W
    head_dim = C // num_heads
    scale = head_dim ** (-0.5)

    ln_w = params["ln_w"].reshape(1, C).astype(jnp.float32)
    ln_b = params["ln_b"].reshape(1, C).astype(jnp.float32)

    # Fold the attention scale into the q columns of the qkv weight & bias
    # (one-time param transform; removes per-step VPU multiplies).
    scale_col = jnp.concatenate([jnp.full((C,), scale, jnp.float32),
                                 jnp.ones((2 * C,), jnp.float32)])
    qkv_w = (params["qkv_w"].astype(jnp.float32)
             * scale_col[None, :]).astype(jnp.bfloat16)          # (C, 3C) bf16
    qkv_b = (params["qkv_b"].astype(jnp.float32)
             * scale_col).reshape(1, 3 * C)                      # (1, 3C) f32
    proj_w = params["proj_w"].astype(jnp.bfloat16)               # (C, C)  bf16
    proj_b = params["proj_b"].reshape(1, C).astype(jnp.float32)  # (1, C)  f32

    # NCHW -> (B, N, C)  (tokens on sublanes, channels on lanes)
    x_tok = jnp.transpose(x, (0, 2, 3, 1)).reshape(B, N, C)

    cfg = _device_config()
    Bt = _pick_windows_per_step(B, N, C, num_heads, cfg)
    grid = (B // Bt,)

    kernel = functools.partial(_block_kernel, num_heads=num_heads, eps=1e-5)

    def _const2d(shape):  # grid-invariant full-array blocks (weights / biases)
        return pl.BlockSpec(shape, lambda b: (0, 0))

    out_tok = pl.pallas_call(
        kernel,
        out_shape=jax.ShapeDtypeStruct((B, N, C), x.dtype),
        grid_spec=pltpu.PrefetchScalarGridSpec(
            num_scalar_prefetch=0,
            grid=grid,
            in_specs=[
                pl.BlockSpec((Bt, N, C), lambda b: (b, 0, 0)),   # x windows
                _const2d((1, C)),                                # ln weight
                _const2d((1, C)),                                # ln bias
                _const2d((C, 3 * C)),                            # qkv weight
                _const2d((1, 3 * C)),                            # qkv bias
                _const2d((C, C)),                                # proj weight
                _const2d((1, C)),                                # proj bias
            ],
            out_specs=pl.BlockSpec((Bt, N, C), lambda b: (b, 0, 0)),
            scratch_shapes=[pltpu.VMEM((Bt * N, C), jnp.float32)],
        ),
        compiler_params=pltpu.CompilerParams(
            dimension_semantics=("parallel",),
            vmem_limit_bytes=cfg["vmem_limit"]),
    )(x_tok, ln_w, ln_b, qkv_w, qkv_b, proj_w, proj_b)

    # (B, N, C) -> NCHW
    return jnp.transpose(out_tok.reshape(B, H, W, C), (0, 3, 1, 2))


def _reference(x, params, *, num_heads):
    """Pure-JAX f32 reference for correctness check."""
    B, C, H, W = x.shape
    N = H * W
    hd = C // num_heads
    scale = hd ** (-0.5)
    xt = jnp.transpose(x, (0, 2, 3, 1)).reshape(B, N, C)
    mean = jnp.mean(xt, axis=-1, keepdims=True)
    var = jnp.mean((xt - mean) ** 2, axis=-1, keepdims=True)
    xn = (xt - mean) / jnp.sqrt(var + 1e-5) * params["ln_w"] + params["ln_b"]
    qkv = xn @ params["qkv_w"] + params["qkv_b"]          # (B, N, 3C)
    qkv = qkv.reshape(B, N, 3, num_heads, hd).transpose(2, 0, 3, 1, 4)
    q, k, v = qkv[0], qkv[1], qkv[2]                      # (B, h, N, hd)
    attn = jnp.einsum("bhnd,bhmd->bhnm", q, k) * scale
    attn = jax.nn.softmax(attn, axis=-1)
    o = jnp.einsum("bhnm,bhmd->bhnd", attn, v)
    o = o.transpose(0, 2, 1, 3).reshape(B, N, C)
    o = o @ params["proj_w"] + params["proj_b"]
    return jnp.transpose(o.reshape(B, H, W, C), (0, 3, 1, 2))


def _init_params(key, dim):
    ks = jax.random.split(key, 6)
    s = 1.0 / math.sqrt(dim)
    return {
        "ln_w": jax.random.normal(ks[0], (dim,), jnp.float32) * 0.1 + 1.0,
        "ln_b": jax.random.normal(ks[1], (dim,), jnp.float32) * 0.1,
        "qkv_w": jax.random.normal(ks[2], (dim, 3 * dim), jnp.float32) * s,
        "qkv_b": jax.random.normal(ks[3], (3 * dim,), jnp.float32) * s,
        "proj_w": jax.random.normal(ks[4], (dim, dim), jnp.float32) * s,
        "proj_b": jax.random.normal(ks[5], (dim,), jnp.float32) * s,
    }


if __name__ == "__main__":
    B, C, H, W = 2, 32, 8, 8
    num_heads = 2

    key = jax.random.PRNGKey(0)
    kx, kp = jax.random.split(key)
    x = jax.random.normal(kx, (B, C, H, W), jnp.float32)
    params = _init_params(kp, C)

    out = window_transformer_block_2d(x, params, num_heads=num_heads)
    out = jax.block_until_ready(out)

    ref = jax.block_until_ready(_reference(x, params, num_heads=num_heads))
    assert out.shape == (B, C, H, W)
    # bf16 matmul operands (f32 accumulation) + approx softmax reciprocal
    # loosen the tolerance vs. the pure-f32 reference.
    assert jnp.allclose(out, ref, atol=3e-2, rtol=3e-2), (
        f"max abs diff = {jnp.max(jnp.abs(out - ref))}")

    print("KERNEL_OK")
</pallas_src>

<mosaic_0001>
module attributes {stable_mosaic.version = 11 : i64} {
  func.func @_block_kernel(%arg0: i32, %arg1: memref<2x64x32xf32, #tpu.memory_space<vmem>>, %arg2: memref<1x32xf32, #tpu.memory_space<vmem>>, %arg3: memref<1x32xf32, #tpu.memory_space<vmem>>, %arg4: memref<32x96xbf16, #tpu.memory_space<vmem>>, %arg5: memref<1x96xf32, #tpu.memory_space<vmem>>, %arg6: memref<32x32xbf16, #tpu.memory_space<vmem>>, %arg7: memref<1x32xf32, #tpu.memory_space<vmem>>, %arg8: memref<2x64x32xf32, #tpu.memory_space<vmem>>, %arg9: memref<128x32xf32, #tpu.memory_space<vmem>>) attributes {dimension_semantics = [#tpu.dimension_semantics<parallel>], iteration_bounds = array<i64: 1>, scalar_prefetch = 0 : i64, scratch_operands = 1 : i64, tpu.core_type = #tpu.core_type<tc>, window_params = [{transform_indices = @transform_0, window_bounds = array<i64: 2, 64, 32>}, {pipeline_mode = #tpu.pipeline_mode<synchronous>, transform_indices = @transform_1, window_bounds = array<i64: 1, 32>}, {pipeline_mode = #tpu.pipeline_mode<synchronous>, transform_indices = @transform_2, window_bounds = array<i64: 1, 32>}, {pipeline_mode = #tpu.pipeline_mode<synchronous>, transform_indices = @transform_3, window_bounds = array<i64: 32, 96>}, {pipeline_mode = #tpu.pipeline_mode<synchronous>, transform_indices = @transform_4, window_bounds = array<i64: 1, 96>}, {pipeline_mode = #tpu.pipeline_mode<synchronous>, transform_indices = @transform_5, window_bounds = array<i64: 32, 32>}, {pipeline_mode = #tpu.pipeline_mode<synchronous>, transform_indices = @transform_6, window_bounds = array<i64: 1, 32>}, {transform_indices = @transform_7, window_bounds = array<i64: 2, 64, 32>}]} {
    %c0 = arith.constant 0 : index
    %c0_0 = arith.constant 0 : index
    %c0_1 = arith.constant 0 : index
    %0 = vector.load %arg1[%c0, %c0_0, %c0_1] : memref<2x64x32xf32, #tpu.memory_space<vmem>>, vector<2x64x32xf32>
    %1 = vector.shape_cast %0 : vector<2x64x32xf32> to vector<128x32xf32>
    %cst = arith.constant dense<0.000000e+00> : vector<128xf32>
    %2 = vector.multi_reduction <add>, %1, %cst [1] : vector<128x32xf32> to vector<128xf32>
    %3 = vector.shape_cast %2 : vector<128xf32> to vector<128x1xf32>
    %cst_2 = arith.constant 3.200000e+01 : f32
    %4 = vector.broadcast %cst_2 : f32 to vector<128x1xf32>
    %5 = arith.divf %3, %4 : vector<128x1xf32>
    %6 = vector.broadcast %5 : vector<128x1xf32> to vector<128x32xf32>
    %7 = arith.subf %1, %6 : vector<128x32xf32>
    %8 = arith.mulf %7, %7 : vector<128x32xf32>
    %cst_3 = arith.constant dense<0.000000e+00> : vector<128xf32>
    %9 = vector.multi_reduction <add>, %8, %cst_3 [1] : vector<128x32xf32> to vector<128xf32>
    %10 = vector.shape_cast %9 : vector<128xf32> to vector<128x1xf32>
    %cst_4 = arith.constant 3.200000e+01 : f32
    %11 = vector.broadcast %cst_4 : f32 to vector<128x1xf32>
    %12 = arith.divf %10, %11 : vector<128x1xf32>
    %cst_5 = arith.constant 9.99999974E-6 : f32
    %13 = vector.broadcast %cst_5 : f32 to vector<128x1xf32>
    %14 = arith.addf %12, %13 : vector<128x1xf32>
    %15 = math.rsqrt %14 : vector<128x1xf32>
    %16 = vector.broadcast %15 : vector<128x1xf32> to vector<128x32xf32>
    %17 = arith.mulf %7, %16 : vector<128x32xf32>
    %c0_6 = arith.constant 0 : index
    %c0_7 = arith.constant 0 : index
    %18 = vector.load %arg2[%c0_6, %c0_7] : memref<1x32xf32, #tpu.memory_space<vmem>>, vector<1x32xf32>
    %19 = vector.broadcast %18 : vector<1x32xf32> to vector<128x32xf32>
    %20 = arith.mulf %17, %19 : vector<128x32xf32>
    %c0_8 = arith.constant 0 : index
    %c0_9 = arith.constant 0 : index
    %21 = vector.load %arg3[%c0_8, %c0_9] : memref<1x32xf32, #tpu.memory_space<vmem>>, vector<1x32xf32>
    %22 = vector.broadcast %21 : vector<1x32xf32> to vector<128x32xf32>
    %23 = arith.addf %20, %22 : vector<128x32xf32>
    %24 = arith.truncf %23 : vector<128x32xf32> to vector<128x32xbf16>
    %c0_10 = arith.constant 0 : index
    %c0_11 = arith.constant 0 : index
    %25 = vector.load %arg4[%c0_10, %c0_11] : memref<32x96xbf16, #tpu.memory_space<vmem>>, vector<32x96xbf16>
    %cst_12 = arith.constant dense<0.000000e+00> : vector<128x96xf32>
    %26 = tpu.matmul %24, %25, %cst_12 {dimension_numbers = #tpu.dot_dimension_numbers<[1], [0], [0], [1], [0, 0, 1, 1], [], []>} : vector<128x32xbf16>, vector<32x96xbf16>, vector<128x96xf32> -> vector<128x96xf32>
    %c0_13 = arith.constant 0 : index
    %c0_14 = arith.constant 0 : index
    %27 = vector.load %arg5[%c0_13, %c0_14] : memref<1x96xf32, #tpu.memory_space<vmem>>, vector<1x96xf32>
    %28 = vector.broadcast %27 : vector<1x96xf32> to vector<128x96xf32>
    %29 = arith.addf %26, %28 : vector<128x96xf32>
    %30 = vector.extract_strided_slice %29 {offsets = [0, 0], sizes = [128, 16], strides = [1, 1]} : vector<128x96xf32> to vector<128x16xf32>
    %31 = vector.shape_cast %30 : vector<128x16xf32> to vector<2x64x16xf32>
    %32 = vector.extract_strided_slice %29 {offsets = [0, 16], sizes = [128, 16], strides = [1, 1]} : vector<128x96xf32> to vector<128x16xf32>
    %33 = vector.shape_cast %32 : vector<128x16xf32> to vector<2x64x16xf32>
    %34 = tpu.concatenate %31, %33 in 0 : vector<2x64x16xf32>, vector<2x64x16xf32> -> vector<4x64x16xf32>
    %35 = arith.truncf %34 : vector<4x64x16xf32> to vector<4x64x16xbf16>
    %36 = vector.extract_strided_slice %29 {offsets = [0, 32], sizes = [128, 16], strides = [1, 1]} : vector<128x96xf32> to vector<128x16xf32>
    %37 = vector.shape_cast %36 : vector<128x16xf32> to vector<2x64x16xf32>
    %38 = vector.extract_strided_slice %29 {offsets = [0, 48], sizes = [128, 16], strides = [1, 1]} : vector<128x96xf32> to vector<128x16xf32>
    %39 = vector.shape_cast %38 : vector<128x16xf32> to vector<2x64x16xf32>
    %40 = tpu.concatenate %37, %39 in 0 : vector<2x64x16xf32>, vector<2x64x16xf32> -> vector<4x64x16xf32>
    %41 = arith.truncf %40 : vector<4x64x16xf32> to vector<4x64x16xbf16>
    %42 = vector.extract_strided_slice %29 {offsets = [0, 64], sizes = [128, 16], strides = [1, 1]} : vector<128x96xf32> to vector<128x16xf32>
    %43 = vector.shape_cast %42 : vector<128x16xf32> to vector<2x64x16xf32>
    %44 = vector.extract_strided_slice %29 {offsets = [0, 80], sizes = [128, 16], strides = [1, 1]} : vector<128x96xf32> to vector<128x16xf32>
    %45 = vector.shape_cast %44 : vector<128x16xf32> to vector<2x64x16xf32>
    %46 = tpu.concatenate %43, %45 in 0 : vector<2x64x16xf32>, vector<2x64x16xf32> -> vector<4x64x16xf32>
    %47 = arith.truncf %46 : vector<4x64x16xf32> to vector<4x64x16xbf16>
    %cst_15 = arith.constant dense<0.000000e+00> : vector<4x64x64xf32>
    %48 = tpu.matmul %35, %41, %cst_15 {dimension_numbers = #tpu.dot_dimension_numbers<[2], [2], [1], [1], [0, 0, 0, 1, 1, 1], [0], [0]>} : vector<4x64x16xbf16>, vector<4x64x16xbf16>, vector<4x64x64xf32> -> vector<4x64x64xf32>
    %cst_16 = arith.constant dense<0xFF800000> : vector<4x64xf32>
    %49 = vector.multi_reduction <maximumf>, %48, %cst_16 [2] : vector<4x64x64xf32> to vector<4x64xf32>
    %50 = vector.shape_cast %49 : vector<4x64xf32> to vector<4x64x1xf32>
    %51 = vector.broadcast %50 : vector<4x64x1xf32> to vector<4x64x64xf32>
    %52 = arith.subf %48, %51 : vector<4x64x64xf32>
    %53 = math.exp %52 : vector<4x64x64xf32>
    %cst_17 = arith.constant dense<0.000000e+00> : vector<4x64xf32>
    %54 = vector.multi_reduction <add>, %53, %cst_17 [2] : vector<4x64x64xf32> to vector<4x64xf32>
    %55 = vector.shape_cast %54 : vector<4x64xf32> to vector<4x64x1xf32>
    %56 = tpu.reciprocal %55 {approx = true} : vector<4x64x1xf32> -> vector<4x64x1xf32>
    %57 = arith.truncf %53 : vector<4x64x64xf32> to vector<4x64x64xbf16>
    %cst_18 = arith.constant dense<0.000000e+00> : vector<4x64x16xf32>
    %58 = tpu.matmul %57, %47, %cst_18 {dimension_numbers = #tpu.dot_dimension_numbers<[2], [1], [1], [2], [0, 0, 0, 1, 1, 2], [0], [0]>} : vector<4x64x64xbf16>, vector<4x64x16xbf16>, vector<4x64x16xf32> -> vector<4x64x16xf32>
    %59 = vector.broadcast %56 : vector<4x64x1xf32> to vector<4x64x16xf32>
    %60 = arith.mulf %58, %59 : vector<4x64x16xf32>
    %61 = vector.extract_strided_slice %60 {offsets = [0, 0, 0], sizes = [2, 64, 16], strides = [1, 1, 1]} : vector<4x64x16xf32> to vector<2x64x16xf32>
    %62 = vector.shape_cast %61 : vector<2x64x16xf32> to vector<128x16xf32>
    %c0_19 = arith.constant 0 : index
    %c0_20 = arith.constant 0 : index
    %63 = vector.load %arg9[%c0_19, %c0_20] : memref<128x32xf32, #tpu.memory_space<vmem>>, vector<128x16xf32>
    tpu.vector_store %arg9[%c0_19, %c0_20], %62 {strides = array<i32>} : memref<128x32xf32, #tpu.memory_space<vmem>>, vector<128x16xf32>,
    %64 = vector.extract_strided_slice %60 {offsets = [2, 0, 0], sizes = [2, 64, 16], strides = [1, 1, 1]} : vector<4x64x16xf32> to vector<2x64x16xf32>
    %65 = vector.shape_cast %64 : vector<2x64x16xf32> to vector<128x16xf32>
    %c0_21 = arith.constant 0 : index
    %c16 = arith.constant 16 : index
    %66 = vector.load %arg9[%c0_21, %c16] : memref<128x32xf32, #tpu.memory_space<vmem>>, vector<128x16xf32>
    tpu.vector_store %arg9[%c0_21, %c16], %65 {strides = array<i32>} : memref<128x32xf32, #tpu.memory_space<vmem>>, vector<128x16xf32>,
    %c0_22 = arith.constant 0 : index
    %c0_23 = arith.constant 0 : index
    %67 = vector.load %arg9[%c0_22, %c0_23] : memref<128x32xf32, #tpu.memory_space<vmem>>, vector<128x32xf32>
    %68 = arith.truncf %67 : vector<128x32xf32> to vector<128x32xbf16>
    %c0_24 = arith.constant 0 : index
    %c0_25 = arith.constant 0 : index
    %69 = vector.load %arg6[%c0_24, %c0_25] : memref<32x32xbf16, #tpu.memory_space<vmem>>, vector<32x32xbf16>
    %cst_26 = arith.constant dense<0.000000e+00> : vector<128x32xf32>
    %70 = tpu.matmul %68, %69, %cst_26 {dimension_numbers = #tpu.dot_dimension_numbers<[1], [0], [0], [1], [0, 0, 1, 1], [], []>} : vector<128x32xbf16>, vector<32x32xbf16>, vector<128x32xf32> -> vector<128x32xf32>
    %c0_27 = arith.constant 0 : index
    %c0_28 = arith.constant 0 : index
    %71 = vector.load %arg7[%c0_27, %c0_28] : memref<1x32xf32, #tpu.memory_space<vmem>>, vector<1x32xf32>
    %72 = vector.broadcast %71 : vector<1x32xf32> to vector<128x32xf32>
    %73 = arith.addf %70, %72 : vector<128x32xf32>
    %74 = vector.shape_cast %73 : vector<128x32xf32> to vector<2x64x32xf32>
    %c0_29 = arith.constant 0 : index
    %c0_30 = arith.constant 0 : index
    %c0_31 = arith.constant 0 : index
    %75 = vector.load %arg8[%c0_29, %c0_30, %c0_31] : memref<2x64x32xf32, #tpu.memory_space<vmem>>, vector<2x64x32xf32>
    tpu.vector_store %arg8[%c0_29, %c0_30, %c0_31], %74 {strides = array<i32>} : memref<2x64x32xf32, #tpu.memory_space<vmem>>, vector<2x64x32xf32>,
    return
  }
  func.func @transform_0(%arg0: i32) -> (i32, i32, i32) {
    %c0_i32 = arith.constant 0 : i32
    %c0_i32_0 = arith.constant 0 : i32
    %c0_i32_1 = arith.constant 0 : i32
    return %arg0, %c0_i32, %c0_i32_0 : i32, i32, i32
  }
  func.func @transform_1(%arg0: i32) -> (i32, i32) {
    %c0_i32 = arith.constant 0 : i32
    %c0_i32_0 = arith.constant 0 : i32
    %c0_i32_1 = arith.constant 0 : i32
    return %c0_i32, %c0_i32_0 : i32, i32
  }
  func.func @transform_2(%arg0: i32) -> (i32, i32) {
    %c0_i32 = arith.constant 0 : i32
    %c0_i32_0 = arith.constant 0 : i32
    %c0_i32_1 = arith.constant 0 : i32
    return %c0_i32, %c0_i32_0 : i32, i32
  }
  func.func @transform_3(%arg0: i32) -> (i32, i32) {
    %c0_i32 = arith.constant 0 : i32
    %c0_i32_0 = arith.constant 0 : i32
    %c0_i32_1 = arith.constant 0 : i32
    return %c0_i32, %c0_i32_0 : i32, i32
  }
  func.func @transform_4(%arg0: i32) -> (i32, i32) {
    %c0_i32 = arith.constant 0 : i32
    %c0_i32_0 = arith.constant 0 : i32
    %c0_i32_1 = arith.constant 0 : i32
    return %c0_i32, %c0_i32_0 : i32, i32
  }
  func.func @transform_5(%arg0: i32) -> (i32, i32) {
    %c0_i32 = arith.constant 0 : i32
    %c0_i32_0 = arith.constant 0 : i32
    %c0_i32_1 = arith.constant 0 : i32
    return %c0_i32, %c0_i32_0 : i32, i32
  }
  func.func @transform_6(%arg0: i32) -> (i32, i32) {
    %c0_i32 = arith.constant 0 : i32
    %c0_i32_0 = arith.constant 0 : i32
    %c0_i32_1 = arith.constant 0 : i32
    return %c0_i32, %c0_i32_0 : i32, i32
  }
  func.func @transform_7(%arg0: i32) -> (i32, i32, i32) {
    %c0_i32 = arith.constant 0 : i32
    %c0_i32_0 = arith.constant 0 : i32
    %c0_i32_1 = arith.constant 0 : i32
    return %arg0, %c0_i32, %c0_i32_0 : i32, i32, i32
  }
}

</mosaic_0001>

<llo_original>
// kernel: tpu_custom_call.1
$region0: #{tpu_custom_call.1}
  #allocation0 [shape = 'u32[]', space=smem, size = 0x4, offset = 0x4, fixed_abs, tag = 'smem constant byte address 0x4 - core index']
  #allocation1 [shape = 'u32[144,128]{1,0:T(1,128)}', space=vmem, size = 0x12000, scoped, tag = 'internal scratch']
  #allocation2 [shape = 'f32[128,32]{1,0:T(8,128)}', space=vmem, size = 0x10000, scoped, tag = 'scratch operand']
  %s0 = inlined_call_operand.vmem [shape: f32[2,64,32], index: 0, kind: input, shape index: {}]
  %s1 = inlined_call_operand.vmem [shape: f32[1,32], index: 1, kind: input, shape index: {}]
  %s2 = inlined_call_operand.vmem [shape: f32[1,32], index: 2, kind: input, shape index: {}]
  %s3 = inlined_call_operand.vmem [shape: bf16[32,96], index: 3, kind: input, shape index: {}]
  %s4 = inlined_call_operand.vmem [shape: f32[1,96], index: 4, kind: input, shape index: {}]
  %s5 = inlined_call_operand.vmem [shape: bf16[32,32], index: 5, kind: input, shape index: {}]
  %s6 = inlined_call_operand.vmem [shape: f32[1,32], index: 6, kind: input, shape index: {}]
  %s7 = inlined_call_operand.vmem [shape: f32[2,64,32], index: 7, kind: output, shape index: {}]
  %s8 = sld [smem:[#allocation0]]
  $region38: #{tpu_custom_call.1} parent=0
    _
  %s10 = ssub.s32 1, %s8
  %s11 = scalar_select 0, %s10, %s8
  // Predicated region
  $region2: #{tpu_custom_call.1} parent=0 // pred_check
    _
  $region3: #{tpu_custom_call.1} parent=0 // pred_check_branch
    %13 = sbr.rel (0) target = $region5
  $region4: #{tpu_custom_call.1} parent=0 // pred_region
    _
  $region5: #{tpu_custom_call.1} parent=0 // pred_fallthru
    _
  // Predicated region
  $region6: #{tpu_custom_call.1} parent=0 // pred_check
    _
  $region7: #{tpu_custom_call.1} parent=0 // pred_check_branch
    %15 = sbr.rel (0) target = $region9
  $region8: #{tpu_custom_call.1} parent=0 // pred_region
    _
  $region9: #{tpu_custom_call.1} parent=0 // pred_fallthru
    _
  // Predicated region
  $region10: #{tpu_custom_call.1} parent=0 // pred_check
    _
  $region11: #{tpu_custom_call.1} parent=0 // pred_check_branch
    %17 = sbr.rel (0) target = $region13
  $region12: #{tpu_custom_call.1} parent=0 // pred_region
    _
  $region13: #{tpu_custom_call.1} parent=0 // pred_fallthru
    _
  // Predicated region
  $region14: #{tpu_custom_call.1} parent=0 // pred_check
    _
  $region15: #{tpu_custom_call.1} parent=0 // pred_check_branch
    %19 = sbr.rel (0) target = $region17
  $region16: #{tpu_custom_call.1} parent=0 // pred_region
    _
  $region17: #{tpu_custom_call.1} parent=0 // pred_fallthru
    _
  // Predicated region
  $region18: #{tpu_custom_call.1} parent=0 // pred_check
    _
  $region19: #{tpu_custom_call.1} parent=0 // pred_check_branch
    %21 = sbr.rel (0) target = $region21
  $region20: #{tpu_custom_call.1} parent=0 // pred_region
    _
  $region21: #{tpu_custom_call.1} parent=0 // pred_fallthru
    _
  // Predicated region
  $region22: #{tpu_custom_call.1} parent=0 // pred_check
    _
  $region23: #{tpu_custom_call.1} parent=0 // pred_check_branch
    %23 = sbr.rel (0) target = $region25
  $region24: #{tpu_custom_call.1} parent=0 // pred_region
    _
  $region25: #{tpu_custom_call.1} parent=0 // pred_fallthru
    _
  // Predicated region
  $region26: #{tpu_custom_call.1} parent=0 // pred_check
    _
  $region27: #{tpu_custom_call.1} parent=0 // pred_check_branch
    %25 = sbr.rel (0) target = $region29
  $region28: #{tpu_custom_call.1} parent=0 // pred_region
    _
  $region29: #{tpu_custom_call.1} parent=0 // pred_fallthru
    _
  %v27 = vld [vmem:[%s0] sm:$0xff]
  %v28 = vld [vmem:[%s0 + $0x8] sm:$0xff]
  %v29 = vld [vmem:[%s0 + $0x10] sm:$0xff]
  %v30 = vld [vmem:[%s0 + $0x18] sm:$0xff]
  %v31 = vld [vmem:[%s0 + $0x20] sm:$0xff]
  %v32 = vld [vmem:[%s0 + $0x28] sm:$0xff]
  %v33 = vld [vmem:[%s0 + $0x30] sm:$0xff]
  %v34 = vld [vmem:[%s0 + $0x38] sm:$0xff]
  %v35 = vld [vmem:[%s0 + $0x40] sm:$0xff]
  %v36 = vld [vmem:[%s0 + $0x48] sm:$0xff]
  %v37 = vld [vmem:[%s0 + $0x50] sm:$0xff]
  %v38 = vld [vmem:[%s0 + $0x58] sm:$0xff]
  %v39 = vld [vmem:[%s0 + $0x60] sm:$0xff]
  %v40 = vld [vmem:[%s0 + $0x68] sm:$0xff]
  %v41 = vld [vmem:[%s0 + $0x70] sm:$0xff]
  %v42 = vld [vmem:[%s0 + $0x78] sm:$0xff]
  %vm43 = vcmask 261120
  %v44 = vsel %vm43, %v27, 0.0
  %45 = vadd.xlane.f32.xlu0 %v44
  %v46 = vpop.xlane.xlu0 %45
  %v47 = vsel %vm43, %v28, 0.0
  %48 = vadd.xlane.f32.xlu0 %v47
  %v49 = vpop.xlane.xlu0 %48
  %v50 = vsel %vm43, %v29, 0.0
  %51 = vadd.xlane.f32.xlu0 %v50
  %v52 = vpop.xlane.xlu0 %51
  %v53 = vsel %vm43, %v30, 0.0
  %54 = vadd.xlane.f32.xlu0 %v53
  %v55 = vpop.xlane.xlu0 %54
  %v56 = vsel %vm43, %v31, 0.0
  %57 = vadd.xlane.f32.xlu0 %v56
  %v58 = vpop.xlane.xlu0 %57
  %v59 = vsel %vm43, %v32, 0.0
  %60 = vadd.xlane.f32.xlu0 %v59
  %v61 = vpop.xlane.xlu0 %60
  %v62 = vsel %vm43, %v33, 0.0
  %63 = vadd.xlane.f32.xlu0 %v62
  %v64 = vpop.xlane.xlu0 %63
  %v65 = vsel %vm43, %v34, 0.0
  %66 = vadd.xlane.f32.xlu0 %v65
  %v67 = vpop.xlane.xlu0 %66
  %v68 = vsel %vm43, %v35, 0.0
  %69 = vadd.xlane.f32.xlu0 %v68
  %v70 = vpop.xlane.xlu0 %69
  %v71 = vsel %vm43, %v36, 0.0
  %72 = vadd.xlane.f32.xlu0 %v71
  %v73 = vpop.xlane.xlu0 %72
  %v74 = vsel %vm43, %v37, 0.0
  %75 = vadd.xlane.f32.xlu0 %v74
  %v76 = vpop.xlane.xlu0 %75
  %v77 = vsel %vm43, %v38, 0.0
  %78 = vadd.xlane.f32.xlu0 %v77
  %v79 = vpop.xlane.xlu0 %78
  %v80 = vsel %vm43, %v39, 0.0
  %81 = vadd.xlane.f32.xlu0 %v80
  %v82 = vpop.xlane.xlu0 %81
  %v83 = vsel %vm43, %v40, 0.0
  %84 = vadd.xlane.f32.xlu0 %v83
  %v85 = vpop.xlane.xlu0 %84
  %v86 = vsel %vm43, %v41, 0.0
  %87 = vadd.xlane.f32.xlu0 %v86
  %v88 = vpop.xlane.xlu0 %87
  %v89 = vsel %vm43, %v42, 0.0
  %90 = vadd.xlane.f32.xlu0 %v89
  %v91 = vpop.xlane.xlu0 %90
  %v92 = vrcp.pop 32.0
  %v93 = vmul.f32 %v46, %v92
  %v94 = vmul.f32 %v49, %v92
  %v95 = vmul.f32 %v52, %v92
  %v96 = vmul.f32 %v55, %v92
  %v97 = vmul.f32 %v58, %v92
  %v98 = vmul.f32 %v61, %v92
  %v99 = vmul.f32 %v64, %v92
  %v100 = vmul.f32 %v67, %v92
  %v101 = vmul.f32 %v70, %v92
  %v102 = vmul.f32 %v73, %v92
  %v103 = vmul.f32 %v76, %v92
  %v104 = vmul.f32 %v79, %v92
  %v105 = vmul.f32 %v82, %v92
  %v106 = vmul.f32 %v85, %v92
  %v107 = vmul.f32 %v88, %v92
  %v108 = vmul.f32 %v91, %v92
  %v109 = vsub.f32 %v27, %v93
  %v110 = vsub.f32 %v28, %v94
  %v111 = vsub.f32 %v29, %v95
  %v112 = vsub.f32 %v30, %v96
  %v113 = vsub.f32 %v31, %v97
  %v114 = vsub.f32 %v32, %v98
  %v115 = vsub.f32 %v33, %v99
  %v116 = vsub.f32 %v34, %v100
  %v117 = vsub.f32 %v35, %v101
  %v118 = vsub.f32 %v36, %v102
  %v119 = vsub.f32 %v37, %v103
  %v120 = vsub.f32 %v38, %v104
  %v121 = vsub.f32 %v39, %v105
  %v122 = vsub.f32 %v40, %v106
  %v123 = vsub.f32 %v41, %v107
  %v124 = vsub.f32 %v42, %v108
  %v125 = vmul.f32 %v109, %v109
  %v126 = vmul.f32 %v110, %v110
  %v127 = vmul.f32 %v111, %v111
  %v128 = vmul.f32 %v112, %v112
  %v129 = vmul.f32 %v113, %v113
  %v130 = vmul.f32 %v114, %v114
  %v131 = vmul.f32 %v115, %v115
  %v132 = vmul.f32 %v116, %v116
  %v133 = vmul.f32 %v117, %v117
  %v134 = vmul.f32 %v118, %v118
  %v135 = vmul.f32 %v119, %v119
  %v136 = vmul.f32 %v120, %v120
  %v137 = vmul.f32 %v121, %v121
  %v138 = vmul.f32 %v122, %v122
  %v139 = vmul.f32 %v123, %v123
  %v140 = vmul.f32 %v124, %v124
  %v141 = vsel %vm43, %v125, 0.0
  %142 = vadd.xlane.f32.xlu0 %v141
  %v143 = vpop.xlane.xlu0 %142
  %v144 = vsel %vm43, %v126, 0.0
  %145 = vadd.xlane.f32.xlu0 %v144
  %v146 = vpop.xlane.xlu0 %145
  %v147 = vsel %vm43, %v127, 0.0
  %148 = vadd.xlane.f32.xlu0 %v147
  %v149 = vpop.xlane.xlu0 %148
  %v150 = vsel %vm43, %v128, 0.0
  %151 = vadd.xlane.f32.xlu0 %v150
  %v152 = vpop.xlane.xlu0 %151
  %v153 = vsel %vm43, %v129, 0.0
  %154 = vadd.xlane.f32.xlu0 %v153
  %v155 = vpop.xlane.xlu0 %154
  %v156 = vsel %vm43, %v130, 0.0
  %157 = vadd.xlane.f32.xlu0 %v156
  %v158 = vpop.xlane.xlu0 %157
  %v159 = vsel %vm43, %v131, 0.0
  %160 = vadd.xlane.f32.xlu0 %v159
  %v161 = vpop.xlane.xlu0 %160
  %v162 = vsel %vm43, %v132, 0.0
  %163 = vadd.xlane.f32.xlu0 %v162
  %v164 = vpop.xlane.xlu0 %163
  %v165 = vsel %vm43, %v133, 0.0
  %166 = vadd.xlane.f32.xlu0 %v165
  %v167 = vpop.xlane.xlu0 %166
  %v168 = vsel %vm43, %v134, 0.0
  %169 = vadd.xlane.f32.xlu0 %v168
  %v170 = vpop.xlane.xlu0 %169
  %v171 = vsel %vm43, %v135, 0.0
  %172 = vadd.xlane.f32.xlu0 %v171
  %v173 = vpop.xlane.xlu0 %172
  %v174 = vsel %vm43, %v136, 0.0
  %175 = vadd.xlane.f32.xlu0 %v174
  %v176 = vpop.xlane.xlu0 %175
  %v177 = vsel %vm43, %v137, 0.0
  %178 = vadd.xlane.f32.xlu0 %v177
  %v179 = vpop.xlane.xlu0 %178
  %v180 = vsel %vm43, %v138, 0.0
  %181 = vadd.xlane.f32.xlu0 %v180
  %v182 = vpop.xlane.xlu0 %181
  %v183 = vsel %vm43, %v139, 0.0
  %184 = vadd.xlane.f32.xlu0 %v183
  %v185 = vpop.xlane.xlu0 %184
  %v186 = vsel %vm43, %v140, 0.0
  %187 = vadd.xlane.f32.xlu0 %v186
  %v188 = vpop.xlane.xlu0 %187
  %v189 = vmul.f32 %v143, %v92
  %v190 = vmul.f32 %v146, %v92
  %v191 = vmul.f32 %v149, %v92
  %v192 = vmul.f32 %v152, %v92
  %v193 = vmul.f32 %v155, %v92
  %v194 = vmul.f32 %v158, %v92
  %v195 = vmul.f32 %v161, %v92
  %v196 = vmul.f32 %v164, %v92
  %v197 = vmul.f32 %v167, %v92
  %v198 = vmul.f32 %v170, %v92
  %v199 = vmul.f32 %v173, %v92
  %v200 = vmul.f32 %v176, %v92
  %v201 = vmul.f32 %v179, %v92
  %v202 = vmul.f32 %v182, %v92
  %v203 = vmul.f32 %v185, %v92
  %v204 = vmul.f32 %v188, %v92
  %v205 = vadd.f32 %v189, 1e-05
  %v206 = vadd.f32 %v190, 1e-05
  %v207 = vadd.f32 %v191, 1e-05
  %v208 = vadd.f32 %v192, 1e-05
  %v209 = vadd.f32 %v193, 1e-05
  %v210 = vadd.f32 %v194, 1e-05
  %v211 = vadd.f32 %v195, 1e-05
  %v212 = vadd.f32 %v196, 1e-05
  %v213 = vadd.f32 %v197, 1e-05
  %v214 = vadd.f32 %v198, 1e-05
  %v215 = vadd.f32 %v199, 1e-05
  %v216 = vadd.f32 %v200, 1e-05
  %v217 = vadd.f32 %v201, 1e-05
  %v218 = vadd.f32 %v202, 1e-05
  %v219 = vadd.f32 %v203, 1e-05
  %v220 = vadd.f32 %v204, 1e-05
  %v221 = vrsqrt.pop %v205
  %v222 = vrsqrt.pop %v206
  %v223 = vrsqrt.pop %v207
  %v224 = vrsqrt.pop %v208
  %v225 = vrsqrt.pop %v209
  %v226 = vrsqrt.pop %v210
  %v227 = vrsqrt.pop %v211
  %v228 = vrsqrt.pop %v212
  %v229 = vrsqrt.pop %v213
  %v230 = vrsqrt.pop %v214
  %v231 = vrsqrt.pop %v215
  %v232 = vrsqrt.pop %v216
  %v233 = vrsqrt.pop %v217
  %v234 = vrsqrt.pop %v218
  %v235 = vrsqrt.pop %v219
  %v236 = vrsqrt.pop %v220
  %v237 = vmul.f32 %v109, %v221
  %v238 = vmul.f32 %v110, %v222
  %v239 = vmul.f32 %v111, %v223
  %v240 = vmul.f32 %v112, %v224
  %v241 = vmul.f32 %v113, %v225
  %v242 = vmul.f32 %v114, %v226
  %v243 = vmul.f32 %v115, %v227
  %v244 = vmul.f32 %v116, %v228
  %v245 = vmul.f32 %v117, %v229
  %v246 = vmul.f32 %v118, %v230
  %v247 = vmul.f32 %v119, %v231
  %v248 = vmul.f32 %v120, %v232
  %v249 = vmul.f32 %v121, %v233
  %v250 = vmul.f32 %v122, %v234
  %v251 = vmul.f32 %v123, %v235
  %v252 = vmul.f32 %v124, %v236
  %v253 = vld [vmem:[%s1] sm:$0x1]
  %v255 = vlaneseq
  %v256 = vshrl.u32 %v255, 7
  %v257 = vsub.s32 0, %v256
  %v258 = vrot.slane %v253, %v257
  %v260 = vmul.f32 %v237, %v258
  %v261 = vmul.f32 %v238, %v258
  %v262 = vmul.f32 %v239, %v258
  %v263 = vmul.f32 %v240, %v258
  %v264 = vmul.f32 %v241, %v258
  %v265 = vmul.f32 %v242, %v258
  %v266 = vmul.f32 %v243, %v258
  %v267 = vmul.f32 %v244, %v258
  %v268 = vmul.f32 %v245, %v258
  %v269 = vmul.f32 %v246, %v258
  %v270 = vmul.f32 %v247, %v258
  %v271 = vmul.f32 %v248, %v258
  %v272 = vmul.f32 %v249, %v258
  %v273 = vmul.f32 %v250, %v258
  %v274 = vmul.f32 %v251, %v258
  %v275 = vmul.f32 %v252, %v258
  %v276 = vld [vmem:[%s2] sm:$0x1]
  %v278 = vlaneseq
  %v279 = vshrl.u32 %v278, 7
  %v280 = vsub.s32 0, %v279
  %v281 = vrot.slane %v276, %v280
  %v283 = vadd.f32 %v260, %v281
  %v284 = vadd.f32 %v261, %v281
  %v285 = vadd.f32 %v262, %v281
  %v286 = vadd.f32 %v263, %v281
  %v287 = vadd.f32 %v264, %v281
  %v288 = vadd.f32 %v265, %v281
  %v289 = vadd.f32 %v266, %v281
  %v290 = vadd.f32 %v267, %v281
  %v291 = vadd.f32 %v268, %v281
  %v292 = vadd.f32 %v269, %v281
  %v293 = vadd.f32 %v270, %v281
  %v294 = vadd.f32 %v271, %v281
  %v295 = vadd.f32 %v272, %v281
  %v296 = vadd.f32 %v273, %v281
  %v297 = vadd.f32 %v274, %v281
  %v298 = vadd.f32 %v275, %v281
  %v299 = vpack.c.bf16 %v284, %v283
  %v300 = vpack.c.bf16 %v286, %v285
  %v301 = vpack.c.bf16 %v288, %v287
  %v302 = vpack.c.bf16 %v290, %v289
  %v303 = vpack.c.bf16 %v292, %v291
  %v304 = vpack.c.bf16 %v294, %v293
  %v305 = vpack.c.bf16 %v296, %v295
  %v306 = vpack.c.bf16 %v298, %v297
  %v307 = vld [vmem:[%s3] sm:$0xf]
  %v308 = vld [vmem:[%s3 + $0x4] sm:$0xf]
  %v309 = vld [vmem:[%s3 + $0x8] sm:$0xf]
  %v310 = vld [vmem:[%s3 + $0xc] sm:$0xf]
  %v311 = vld [vmem:[%s4] sm:$0x1]
  %v313 = vlaneseq
  %v314 = vshrl.u32 %v313, 7
  %v315 = vsub.s32 0, %v314
  %v316 = vrot.slane %v311, %v315
  %v322 = vunpack.c.l.b16 %v307
  %v323 = vunpack.c.l.b16 %v308
  %v324 = vunpack.c.l.b16 %v309
  %v325 = vunpack.c.l.b16 %v310
  %v326 = vpack.c.b16 %v323, %v322
  %v327 = vpack.c.b16 %v325, %v324
  %v331 = vsel %vm43, %v299, 0
  %v334 = vsel %vm43, %v300, 0
  %v337 = vsel %vm43, %v301, 0
  %v340 = vsel %vm43, %v302, 0
  %v343 = vsel %vm43, %v303, 0
  %v346 = vsel %vm43, %v304, 0
  %v349 = vsel %vm43, %v305, 0
  %v352 = vsel %vm43, %v306, 0
  %354 = vmatprep.subr.bf16.mxu0 0
  %355 = vmatpush1.bf16.msra.mxu0 0
  %356 = vmatprep.subr.bf16.mxu0 0
  %357 = vmatpush1.bf16.msra.mxu0 0
  %358 = vmatprep.subr.bf16.mxu0 0
  %359 = vmatpush1.bf16.msra.mxu0 0
  %360 = vmatprep.subr.bf16.mxu0 0
  %361 = vmatpush1.bf16.msra.mxu0 0
  %362 = vmatprep.subr.bf16.mxu0 0
  %363 = vmatpush1.bf16.msra.mxu0 0
  %364 = vmatprep.subr.bf16.mxu0 0
  %365 = vmatpush1.bf16.msra.mxu0 0
  %366 = vmatprep.subr.bf16.mxu0 0
  %367 = vmatpush1.bf16.msra.mxu0 %v327
  %368 = vmatprep.subr.bf16.mxu0 0
  %369 = vmatpush1.bf16.msra.mxu0 %v326
  %370 = vmatprep.subr.bf16.mxu0 0
  %371 = vmatpush2.bf16.msra.mxu0 0
  %372 = vmatprep.subr.bf16.mxu0 0
  %373 = vmatpush2.bf16.msra.mxu0 0
  %374 = vmatprep.subr.bf16.mxu0 0
  %375 = vmatpush2.bf16.msra.mxu0 0
  %376 = vmatprep.subr.bf16.mxu0 0
  %377 = vmatpush2.bf16.msra.mxu0 0
  %378 = vmatprep.subr.bf16.mxu0 0
  %379 = vmatpush2.bf16.msra.mxu0 0
  %380 = vmatprep.subr.bf16.mxu0 0
  %381 = vmatpush2.bf16.msra.mxu0 0
  %382 = vmatprep.subr.bf16.mxu0 0
  %383 = vmatpush2.bf16.msra.mxu0 0
  %384 = vmatprep.subr.bf16.mxu0 0
  %385 = vmatpush2.bf16.msra.mxu0 0
  %386 = vmatprep.mubr.bf16.mxu0 0
  %387 = vmatmul.mubr.bf16.gmra.mxu0 %v331
  %v388 = vpop.f32.mrf.mxu0
  %v389 = vadd.f32 %v316, %v388
  %v390 = vpop.f32.mrf.mxu0
  %v391 = vpop.f32.mrf.mxu0
  %v392 = vadd.f32 %v316, %v391
  %v393 = vpop.f32.mrf.mxu0
  %394 = vmatprep.mubr.bf16.mxu0 0
  %395 = vmatmul.mubr.bf16.gmra.mxu0 %v334
  %v396 = vpop.f32.mrf.mxu0
  %v397 = vadd.f32 %v316, %v396
  %v398 = vpop.f32.mrf.mxu0
  %v399 = vpop.f32.mrf.mxu0
  %v400 = vadd.f32 %v316, %v399
  %v401 = vpop.f32.mrf.mxu0
  %402 = vmatprep.mubr.bf16.mxu0 0
  %403 = vmatmul.mubr.bf16.gmra.mxu0 %v337
  %v404 = vpop.f32.mrf.mxu0
  %v405 = vadd.f32 %v316, %v404
  %v406 = vpop.f32.mrf.mxu0
  %v407 = vpop.f32.mrf.mxu0
  %v408 = vadd.f32 %v316, %v407
  %v409 = vpop.f32.mrf.mxu0
  %410 = vmatprep.mubr.bf16.mxu0 0
  %411 = vmatmul.mubr.bf16.gmra.mxu0 %v340
  %v412 = vpop.f32.mrf.mxu0
  %v413 = vadd.f32 %v316, %v412
  %v414 = vpop.f32.mrf.mxu0
  %v415 = vpop.f32.mrf.mxu0
  %v416 = vadd.f32 %v316, %v415
  %v417 = vpop.f32.mrf.mxu0
  %418 = vmatprep.mubr.bf16.mxu0 0
  %419 = vmatmul.mubr.bf16.gmra.mxu0 %v343
  %v420 = vpop.f32.mrf.mxu0
  %v421 = vadd.f32 %v316, %v420
  %v422 = vpop.f32.mrf.mxu0
  %v423 = vpop.f32.mrf.mxu0
  %v424 = vadd.f32 %v316, %v423
  %v425 = vpop.f32.mrf.mxu0
  %426 = vmatprep.mubr.bf16.mxu0 0
  %427 = vmatmul.mubr.bf16.gmra.mxu0 %v346
  %v428 = vpop.f32.mrf.mxu0
  %v429 = vadd.f32 %v316, %v428
  %v430 = vpop.f32.mrf.mxu0
  %v431 = vpop.f32.mrf.mxu0
  %v432 = vadd.f32 %v316, %v431
  %v433 = vpop.f32.mrf.mxu0
  %434 = vmatprep.mubr.bf16.mxu0 0
  %435 = vmatmul.mubr.bf16.gmra.mxu0 %v349
  %v436 = vpop.f32.mrf.mxu0
  %v437 = vadd.f32 %v316, %v436
  %v438 = vpop.f32.mrf.mxu0
  %v439 = vpop.f32.mrf.mxu0
  %v440 = vadd.f32 %v316, %v439
  %v441 = vpop.f32.mrf.mxu0
  %442 = vmatprep.mubr.bf16.mxu0 0
  %443 = vmatmul.mubr.bf16.gmra.mxu0 %v352
  %v444 = vpop.f32.mrf.mxu0
  %v445 = vadd.f32 %v316, %v444
  %v446 = vpop.f32.mrf.mxu0
  %v447 = vpop.f32.mrf.mxu0
  %v448 = vadd.f32 %v316, %v447
  %v449 = vpop.f32.mrf.mxu0
  %450 = vdwg.mxu0
  %467 = vrot.lane.b32.xlu0 %v389, 112
  %v468 = vpop.permute.xlu0 %467
  %469 = vrot.lane.b32.xlu0 %v392, 112
  %v470 = vpop.permute.xlu0 %469
  %471 = vrot.lane.b32.xlu0 %v397, 112
  %v472 = vpop.permute.xlu0 %471
  %473 = vrot.lane.b32.xlu0 %v400, 112
  %v474 = vpop.permute.xlu0 %473
  %475 = vrot.lane.b32.xlu0 %v405, 112
  %v476 = vpop.permute.xlu0 %475
  %477 = vrot.lane.b32.xlu0 %v408, 112
  %v478 = vpop.permute.xlu0 %477
  %479 = vrot.lane.b32.xlu0 %v413, 112
  %v480 = vpop.permute.xlu0 %479
  %481 = vrot.lane.b32.xlu0 %v416, 112
  %v482 = vpop.permute.xlu0 %481
  %483 = vrot.lane.b32.xlu0 %v421, 112
  %v484 = vpop.permute.xlu0 %483
  %485 = vrot.lane.b32.xlu0 %v424, 112
  %v486 = vpop.permute.xlu0 %485
  %487 = vrot.lane.b32.xlu0 %v429, 112
  %v488 = vpop.permute.xlu0 %487
  %489 = vrot.lane.b32.xlu0 %v432, 112
  %v490 = vpop.permute.xlu0 %489
  %491 = vrot.lane.b32.xlu0 %v437, 112
  %v492 = vpop.permute.xlu0 %491
  %493 = vrot.lane.b32.xlu0 %v440, 112
  %v494 = vpop.permute.xlu0 %493
  %495 = vrot.lane.b32.xlu0 %v445, 112
  %v496 = vpop.permute.xlu0 %495
  %497 = vrot.lane.b32.xlu0 %v448, 112
  %v498 = vpop.permute.xlu0 %497
  %v515 = vpack.c.bf16 %v392, %v389
  %v516 = vpack.c.bf16 %v400, %v397
  %v517 = vpack.c.bf16 %v408, %v405
  %v518 = vpack.c.bf16 %v416, %v413
  %v519 = vpack.c.bf16 %v424, %v421
  %v520 = vpack.c.bf16 %v432, %v429
  %v521 = vpack.c.bf16 %v440, %v437
  %v522 = vpack.c.bf16 %v448, %v445
  %v523 = vpack.c.bf16 %v470, %v468
  %v524 = vpack.c.bf16 %v474, %v472
  %v525 = vpack.c.bf16 %v478, %v476
  %v526 = vpack.c.bf16 %v482, %v480
  %v527 = vpack.c.bf16 %v486, %v484
  %v528 = vpack.c.bf16 %v490, %v488
  %v529 = vpack.c.bf16 %v494, %v492
  %v530 = vpack.c.bf16 %v498, %v496
  %535 = vrot.lane.b32.xlu0 %v515, 96
  %v536 = vpop.permute.xlu0 %535
  %537 = vrot.lane.b32.xlu0 %v516, 96
  %v538 = vpop.permute.xlu0 %537
  %539 = vrot.lane.b32.xlu0 %v517, 96
  %v540 = vpop.permute.xlu0 %539
  %541 = vrot.lane.b32.xlu0 %v518, 96
  %v542 = vpop.permute.xlu0 %541
  %vm543 = vcmask 130048
  %v545 = vsel %vm543, %v515, 0
  %v548 = vsel %vm543, %v516, 0
  %v551 = vsel %vm543, %v517, 0
  %v554 = vsel %vm543, %v518, 0
  %v557 = vsel %vm543, %v536, 0
  %v560 = vsel %vm543, %v538, 0
  %v563 = vsel %vm543, %v540, 0
  %v566 = vsel %vm543, %v542, 0
  %568 = vmatprep.subr.bf16.mxu0 0
  %569 = vmatpush1.bf16.xpose.msra.mxu0 0
  %570 = vmatprep.subr.bf16.mxu0 0
  %571 = vmatpush1.bf16.xpose.msra.mxu0 0
  %572 = vmatprep.subr.bf16.mxu0 0
  %573 = vmatpush1.bf16.xpose.msra.mxu0 0
  %574 = vmatprep.subr.bf16.mxu0 0
  %575 = vmatpush1.bf16.xpose.msra.mxu0 0
  %576 = vmatprep.subr.bf16.mxu0 0
  %577 = vmatpush1.bf16.xpose.msra.mxu0 %v566
  %578 = vmatprep.subr.bf16.mxu0 0
  %579 = vmatpush1.bf16.xpose.msra.mxu0 %v563
  %580 = vmatprep.subr.bf16.mxu0 0
  %581 = vmatpush1.bf16.xpose.msra.mxu0 %v560
  %582 = vmatprep.subr.bf16.mxu0 0
  %583 = vmatpush1.bf16.xpose.msra.mxu0 %v557
  %584 = vmatprep.subr.bf16.mxu0 0
  %585 = vmatpush2.bf16.xpose.msra.mxu0 0
  %586 = vmatprep.subr.bf16.mxu0 0
  %587 = vmatpush2.bf16.xpose.msra.mxu0 0
  %588 = vmatprep.subr.bf16.mxu0 0
  %589 = vmatpush2.bf16.xpose.msra.mxu0 0
  %590 = vmatprep.subr.bf16.mxu0 0
  %591 = vmatpush2.bf16.xpose.msra.mxu0 0
  %592 = vmatprep.subr.bf16.mxu0 0
  %593 = vmatpush2.bf16.xpose.msra.mxu0 0
  %594 = vmatprep.subr.bf16.mxu0 0
  %595 = vmatpush2.bf16.xpose.msra.mxu0 0
  %596 = vmatprep.subr.bf16.mxu0 0
  %597 = vmatpush2.bf16.xpose.msra.mxu0 0
  %598 = vmatprep.subr.bf16.mxu0 0
  %599 = vmatpush2.bf16.xpose.msra.mxu0 0
  %600 = vmatprep.mubr.bf16.mxu0 0
  %601 = vmatmul.mubr.bf16.gmra.mxu0 %v545
  %v602 = vpop.f32.mrf.mxu0
  %v603 = vadd.f32 0.0, %v602
  %v604 = vpop.f32.mrf.mxu0
  %v605 = vpop.f32.mrf.mxu0
  %v606 = vadd.f32 0.0, %v605
  %v607 = vpop.f32.mrf.mxu0
  %608 = vmatprep.mubr.bf16.mxu0 0
  %609 = vmatmul.mubr.bf16.gmra.mxu0 %v548
  %v610 = vpop.f32.mrf.mxu0
  %v611 = vadd.f32 0.0, %v610
  %v612 = vpop.f32.mrf.mxu0
  %v613 = vpop.f32.mrf.mxu0
  %v614 = vadd.f32 0.0, %v613
  %v615 = vpop.f32.mrf.mxu0
  %616 = vmatprep.mubr.bf16.mxu0 0
  %617 = vmatmul.mubr.bf16.gmra.mxu0 %v551
  %v618 = vpop.f32.mrf.mxu0
  %v619 = vadd.f32 0.0, %v618
  %v620 = vpop.f32.mrf.mxu0
  %v621 = vpop.f32.mrf.mxu0
  %v622 = vadd.f32 0.0, %v621
  %v623 = vpop.f32.mrf.mxu0
  %624 = vmatprep.mubr.bf16.mxu0 0
  %625 = vmatmul.mubr.bf16.gmra.mxu0 %v554
  %v626 = vpop.f32.mrf.mxu0
  %v627 = vadd.f32 0.0, %v626
  %v628 = vpop.f32.mrf.mxu0
  %v629 = vpop.f32.mrf.mxu0
  %v630 = vadd.f32 0.0, %v629
  %v631 = vpop.f32.mrf.mxu0
  %632 = vdwg.mxu0
  %637 = vrot.lane.b32.xlu0 %v519, 96
  %v638 = vpop.permute.xlu0 %637
  %639 = vrot.lane.b32.xlu0 %v520, 96
  %v640 = vpop.permute.xlu0 %639
  %641 = vrot.lane.b32.xlu0 %v521, 96
  %v642 = vpop.permute.xlu0 %641
  %643 = vrot.lane.b32.xlu0 %v522, 96
  %v644 = vpop.permute.xlu0 %643
  %v646 = vsel %vm543, %v519, 0
  %v649 = vsel %vm543, %v520, 0
  %v652 = vsel %vm543, %v521, 0
  %v655 = vsel %vm543, %v522, 0
  %v658 = vsel %vm543, %v638, 0
  %v661 = vsel %vm543, %v640, 0
  %v664 = vsel %vm543, %v642, 0
  %v667 = vsel %vm543, %v644, 0
  %669 = vmatprep.subr.bf16.mxu0 0
  %670 = vmatpush1.bf16.xpose.msra.mxu0 0
  %671 = vmatprep.subr.bf16.mxu0 0
  %672 = vmatpush1.bf16.xpose.msra.mxu0 0
  %673 = vmatprep.subr.bf16.mxu0 0
  %674 = vmatpush1.bf16.xpose.msra.mxu0 0
  %675 = vmatprep.subr.bf16.mxu0 0
  %676 = vmatpush1.bf16.xpose.msra.mxu0 0
  %677 = vmatprep.subr.bf16.mxu0 0
  %678 = vmatpush1.bf16.xpose.msra.mxu0 %v667
  %679 = vmatprep.subr.bf16.mxu0 0
  %680 = vmatpush1.bf16.xpose.msra.mxu0 %v664
  %681 = vmatprep.subr.bf16.mxu0 0
  %682 = vmatpush1.bf16.xpose.msra.mxu0 %v661
  %683 = vmatprep.subr.bf16.mxu0 0
  %684 = vmatpush1.bf16.xpose.msra.mxu0 %v658
  %685 = vmatprep.subr.bf16.mxu0 0
  %686 = vmatpush2.bf16.xpose.msra.mxu0 0
  %687 = vmatprep.subr.bf16.mxu0 0
  %688 = vmatpush2.bf16.xpose.msra.mxu0 0
  %689 = vmatprep.subr.bf16.mxu0 0
  %690 = vmatpush2.bf16.xpose.msra.mxu0 0
  %691 = vmatprep.subr.bf16.mxu0 0
  %692 = vmatpush2.bf16.xpose.msra.mxu0 0
  %693 = vmatprep.subr.bf16.mxu0 0
  %694 = vmatpush2.bf16.xpose.msra.mxu0 0
  %695 = vmatprep.subr.bf16.mxu0 0
  %696 = vmatpush2.bf16.xpose.msra.mxu0 0
  %697 = vmatprep.subr.bf16.mxu0 0
  %698 = vmatpush2.bf16.xpose.msra.mxu0 0
  %699 = vmatprep.subr.bf16.mxu0 0
  %700 = vmatpush2.bf16.xpose.msra.mxu0 0
  %701 = vmatprep.mubr.bf16.mxu0 0
  %702 = vmatmul.mubr.bf16.gmra.mxu0 %v646
  %v703 = vpop.f32.mrf.mxu0
  %v704 = vadd.f32 0.0, %v703
  %v705 = vpop.f32.mrf.mxu0
  %v706 = vpop.f32.mrf.mxu0
  %v707 = vadd.f32 0.0, %v706
  %v708 = vpop.f32.mrf.mxu0
  %709 = vmatprep.mubr.bf16.mxu0 0
  %710 = vmatmul.mubr.bf16.gmra.mxu0 %v649
  %v711 = vpop.f32.mrf.mxu0
  %v712 = vadd.f32 0.0, %v711
  %v713 = vpop.f32.mrf.mxu0
  %v714 = vpop.f32.mrf.mxu0
  %v715 = vadd.f32 0.0, %v714
  %v716 = vpop.f32.mrf.mxu0
  %717 = vmatprep.mubr.bf16.mxu0 0
  %718 = vmatmul.mubr.bf16.gmra.mxu0 %v652
  %v719 = vpop.f32.mrf.mxu0
  %v720 = vadd.f32 0.0, %v719
  %v721 = vpop.f32.mrf.mxu0
  %v722 = vpop.f32.mrf.mxu0
  %v723 = vadd.f32 0.0, %v722
  %v724 = vpop.f32.mrf.mxu0
  %725 = vmatprep.mubr.bf16.mxu0 0
  %726 = vmatmul.mubr.bf16.gmra.mxu0 %v655
  %v727 = vpop.f32.mrf.mxu0
  %v728 = vadd.f32 0.0, %v727
  %v729 = vpop.f32.mrf.mxu0
  %v730 = vpop.f32.mrf.mxu0
  %v731 = vadd.f32 0.0, %v730
  %v732 = vpop.f32.mrf.mxu0
  %733 = vdwg.mxu0
  %738 = vrot.lane.b32.xlu0 %v523, 96
  %v739 = vpop.permute.xlu0 %738
  %740 = vrot.lane.b32.xlu0 %v524, 96
  %v741 = vpop.permute.xlu0 %740
  %742 = vrot.lane.b32.xlu0 %v525, 96
  %v743 = vpop.permute.xlu0 %742
  %744 = vrot.lane.b32.xlu0 %v526, 96
  %v745 = vpop.permute.xlu0 %744
  %v747 = vsel %vm543, %v523, 0
  %v750 = vsel %vm543, %v524, 0
  %v753 = vsel %vm543, %v525, 0
  %v756 = vsel %vm543, %v526, 0
  %v759 = vsel %vm543, %v739, 0
  %v762 = vsel %vm543, %v741, 0
  %v765 = vsel %vm543, %v743, 0
  %v768 = vsel %vm543, %v745, 0
  %770 = vmatprep.subr.bf16.mxu0 0
  %771 = vmatpush1.bf16.xpose.msra.mxu0 0
  %772 = vmatprep.subr.bf16.mxu0 0
  %773 = vmatpush1.bf16.xpose.msra.mxu0 0
  %774 = vmatprep.subr.bf16.mxu0 0
  %775 = vmatpush1.bf16.xpose.msra.mxu0 0
  %776 = vmatprep.subr.bf16.mxu0 0
  %777 = vmatpush1.bf16.xpose.msra.mxu0 0
  %778 = vmatprep.subr.bf16.mxu0 0
  %779 = vmatpush1.bf16.xpose.msra.mxu0 %v768
  %780 = vmatprep.subr.bf16.mxu0 0
  %781 = vmatpush1.bf16.xpose.msra.mxu0 %v765
  %782 = vmatprep.subr.bf16.mxu0 0
  %783 = vmatpush1.bf16.xpose.msra.mxu0 %v762
  %784 = vmatprep.subr.bf16.mxu0 0
  %785 = vmatpush1.bf16.xpose.msra.mxu0 %v759
  %786 = vmatprep.subr.bf16.mxu0 0
  %787 = vmatpush2.bf16.xpose.msra.mxu0 0
  %788 = vmatprep.subr.bf16.mxu0 0
  %789 = vmatpush2.bf16.xpose.msra.mxu0 0
  %790 = vmatprep.subr.bf16.mxu0 0
  %791 = vmatpush2.bf16.xpose.msra.mxu0 0
  %792 = vmatprep.subr.bf16.mxu0 0
  %793 = vmatpush2.bf16.xpose.msra.mxu0 0
  %794 = vmatprep.subr.bf16.mxu0 0
  %795 = vmatpush2.bf16.xpose.msra.mxu0 0
  %796 = vmatprep.subr.bf16.mxu0 0
  %797 = vmatpush2.bf16.xpose.msra.mxu0 0
  %798 = vmatprep.subr.bf16.mxu0 0
  %799 = vmatpush2.bf16.xpose.msra.mxu0 0
  %800 = vmatprep.subr.bf16.mxu0 0
  %801 = vmatpush2.bf16.xpose.msra.mxu0 0
  %802 = vmatprep.mubr.bf16.mxu0 0
  %803 = vmatmul.mubr.bf16.gmra.mxu0 %v747
  %v804 = vpop.f32.mrf.mxu0
  %v805 = vadd.f32 0.0, %v804
  %v806 = vpop.f32.mrf.mxu0
  %v807 = vpop.f32.mrf.mxu0
  %v808 = vadd.f32 0.0, %v807
  %v809 = vpop.f32.mrf.mxu0
  %810 = vmatprep.mubr.bf16.mxu0 0
  %811 = vmatmul.mubr.bf16.gmra.mxu0 %v750
  %v812 = vpop.f32.mrf.mxu0
  %v813 = vadd.f32 0.0, %v812
  %v814 = vpop.f32.mrf.mxu0
  %v815 = vpop.f32.mrf.mxu0
  %v816 = vadd.f32 0.0, %v815
  %v817 = vpop.f32.mrf.mxu0
  %818 = vmatprep.mubr.bf16.mxu0 0
  %819 = vmatmul.mubr.bf16.gmra.mxu0 %v753
  %v820 = vpop.f32.mrf.mxu0
  %v821 = vadd.f32 0.0, %v820
  %v822 = vpop.f32.mrf.mxu0
  %v823 = vpop.f32.mrf.mxu0
  %v824 = vadd.f32 0.0, %v823
  %v825 = vpop.f32.mrf.mxu0
  %826 = vmatprep.mubr.bf16.mxu0 0
  %827 = vmatmul.mubr.bf16.gmra.mxu0 %v756
  %v828 = vpop.f32.mrf.mxu0
  %v829 = vadd.f32 0.0, %v828
  %v830 = vpop.f32.mrf.mxu0
  %v831 = vpop.f32.mrf.mxu0
  %v832 = vadd.f32 0.0, %v831
  %v833 = vpop.f32.mrf.mxu0
  %834 = vdwg.mxu0
  %839 = vrot.lane.b32.xlu0 %v527, 96
  %v840 = vpop.permute.xlu0 %839
  %841 = vrot.lane.b32.xlu0 %v528, 96
  %v842 = vpop.permute.xlu0 %841
  %843 = vrot.lane.b32.xlu0 %v529, 96
  %v844 = vpop.permute.xlu0 %843
  %845 = vrot.lane.b32.xlu0 %v530, 96
  %v846 = vpop.permute.xlu0 %845
  %v848 = vsel %vm543, %v527, 0
  %v851 = vsel %vm543, %v528, 0
  %v854 = vsel %vm543, %v529, 0
  %v857 = vsel %vm543, %v530, 0
  %v860 = vsel %vm543, %v840, 0
  %v863 = vsel %vm543, %v842, 0
  %v866 = vsel %vm543, %v844, 0
  %v869 = vsel %vm543, %v846, 0
  %871 = vmatprep.subr.bf16.mxu0 0
  %872 = vmatpush1.bf16.xpose.msra.mxu0 0
  %873 = vmatprep.subr.bf16.mxu0 0
  %874 = vmatpush1.bf16.xpose.msra.mxu0 0
  %875 = vmatprep.subr.bf16.mxu0 0
  %876 = vmatpush1.bf16.xpose.msra.mxu0 0
  %877 = vmatprep.subr.bf16.mxu0 0
  %878 = vmatpush1.bf16.xpose.msra.mxu0 0
  %879 = vmatprep.subr.bf16.mxu0 0
  %880 = vmatpush1.bf16.xpose.msra.mxu0 %v869
  %881 = vmatprep.subr.bf16.mxu0 0
  %882 = vmatpush1.bf16.xpose.msra.mxu0 %v866
  %883 = vmatprep.subr.bf16.mxu0 0
  %884 = vmatpush1.bf16.xpose.msra.mxu0 %v863
  %885 = vmatprep.subr.bf16.mxu0 0
  %886 = vmatpush1.bf16.xpose.msra.mxu0 %v860
  %887 = vmatprep.subr.bf16.mxu0 0
  %888 = vmatpush2.bf16.xpose.msra.mxu0 0
  %889 = vmatprep.subr.bf16.mxu0 0
  %890 = vmatpush2.bf16.xpose.msra.mxu0 0
  %891 = vmatprep.subr.bf16.mxu0 0
  %892 = vmatpush2.bf16.xpose.msra.mxu0 0
  %893 = vmatprep.subr.bf16.mxu0 0
  %894 = vmatpush2.bf16.xpose.msra.mxu0 0
  %895 = vmatprep.subr.bf16.mxu0 0
  %896 = vmatpush2.bf16.xpose.msra.mxu0 0
  %897 = vmatprep.subr.bf16.mxu0 0
  %898 = vmatpush2.bf16.xpose.msra.mxu0 0
  %899 = vmatprep.subr.bf16.mxu0 0
  %900 = vmatpush2.bf16.xpose.msra.mxu0 0
  %901 = vmatprep.subr.bf16.mxu0 0
  %902 = vmatpush2.bf16.xpose.msra.mxu0 0
  %903 = vmatprep.mubr.bf16.mxu0 0
  %904 = vmatmul.mubr.bf16.gmra.mxu0 %v848
  %v905 = vpop.f32.mrf.mxu0
  %v906 = vadd.f32 0.0, %v905
  %v907 = vpop.f32.mrf.mxu0
  %v908 = vpop.f32.mrf.mxu0
  %v909 = vadd.f32 0.0, %v908
  %v910 = vpop.f32.mrf.mxu0
  %911 = vmatprep.mubr.bf16.mxu0 0
  %912 = vmatmul.mubr.bf16.gmra.mxu0 %v851
  %v913 = vpop.f32.mrf.mxu0
  %v914 = vadd.f32 0.0, %v913
  %v915 = vpop.f32.mrf.mxu0
  %v916 = vpop.f32.mrf.mxu0
  %v917 = vadd.f32 0.0, %v916
  %v918 = vpop.f32.mrf.mxu0
  %919 = vmatprep.mubr.bf16.mxu0 0
  %920 = vmatmul.mubr.bf16.gmra.mxu0 %v854
  %v921 = vpop.f32.mrf.mxu0
  %v922 = vadd.f32 0.0, %v921
  %v923 = vpop.f32.mrf.mxu0
  %v924 = vpop.f32.mrf.mxu0
  %v925 = vadd.f32 0.0, %v924
  %v926 = vpop.f32.mrf.mxu0
  %927 = vmatprep.mubr.bf16.mxu0 0
  %928 = vmatmul.mubr.bf16.gmra.mxu0 %v857
  %v929 = vpop.f32.mrf.mxu0
  %v930 = vadd.f32 0.0, %v929
  %v931 = vpop.f32.mrf.mxu0
  %v932 = vpop.f32.mrf.mxu0
  %v933 = vadd.f32 0.0, %v932
  %v934 = vpop.f32.mrf.mxu0
  %935 = vdwg.mxu0
  %vm936 = vcmask 523264
  %v937 = vsel %vm936, %v603, -inf
  %938 = vmax.xlane.f32.xlu0 %v937
  %v939 = vpop.xlane.xlu0 %938
  %v940 = vsel %vm936, %v606, -inf
  %941 = vmax.xlane.f32.xlu0 %v940
  %v942 = vpop.xlane.xlu0 %941
  %v943 = vsel %vm936, %v611, -inf
  %944 = vmax.xlane.f32.xlu0 %v943
  %v945 = vpop.xlane.xlu0 %944
  %v946 = vsel %vm936, %v614, -inf
  %947 = vmax.xlane.f32.xlu0 %v946
  %v948 = vpop.xlane.xlu0 %947
  %v949 = vsel %vm936, %v619, -inf
  %950 = vmax.xlane.f32.xlu0 %v949
  %v951 = vpop.xlane.xlu0 %950
  %v952 = vsel %vm936, %v622, -inf
  %953 = vmax.xlane.f32.xlu0 %v952
  %v954 = vpop.xlane.xlu0 %953
  %v955 = vsel %vm936, %v627, -inf
  %956 = vmax.xlane.f32.xlu0 %v955
  %v957 = vpop.xlane.xlu0 %956
  %v958 = vsel %vm936, %v630, -inf
  %959 = vmax.xlane.f32.xlu0 %v958
  %v960 = vpop.xlane.xlu0 %959
  %v961 = vsel %vm936, %v704, -inf
  %962 = vmax.xlane.f32.xlu0 %v961
  %v963 = vpop.xlane.xlu0 %962
  %v964 = vsel %vm936, %v707, -inf
  %965 = vmax.xlane.f32.xlu0 %v964
  %v966 = vpop.xlane.xlu0 %965
  %v967 = vsel %vm936, %v712, -inf
  %968 = vmax.xlane.f32.xlu0 %v967
  %v969 = vpop.xlane.xlu0 %968
  %v970 = vsel %vm936, %v715, -inf
  %971 = vmax.xlane.f32.xlu0 %v970
  %v972 = vpop.xlane.xlu0 %971
  %v973 = vsel %vm936, %v720, -inf
  %974 = vmax.xlane.f32.xlu0 %v973
  %v975 = vpop.xlane.xlu0 %974
  %v976 = vsel %vm936, %v723, -inf
  %977 = vmax.xlane.f32.xlu0 %v976
  %v978 = vpop.xlane.xlu0 %977
  %v979 = vsel %vm936, %v728, -inf
  %980 = vmax.xlane.f32.xlu0 %v979
  %v981 = vpop.xlane.xlu0 %980
  %v982 = vsel %vm936, %v731, -inf
  %983 = vmax.xlane.f32.xlu0 %v982
  %v984 = vpop.xlane.xlu0 %983
  %v985 = vsel %vm936, %v805, -inf
  %986 = vmax.xlane.f32.xlu0 %v985
  %v987 = vpop.xlane.xlu0 %986
  %v988 = vsel %vm936, %v808, -inf
  %989 = vmax.xlane.f32.xlu0 %v988
  %v990 = vpop.xlane.xlu0 %989
  %v991 = vsel %vm936, %v813, -inf
  %992 = vmax.xlane.f32.xlu0 %v991
  %v993 = vpop.xlane.xlu0 %992
  %v994 = vsel %vm936, %v816, -inf
  %995 = vmax.xlane.f32.xlu0 %v994
  %v996 = vpop.xlane.xlu0 %995
  %v997 = vsel %vm936, %v821, -inf
  %998 = vmax.xlane.f32.xlu0 %v997
  %v999 = vpop.xlane.xlu0 %998
  %v1000 = vsel %vm936, %v824, -inf
  %1001 = vmax.xlane.f32.xlu0 %v1000
  %v1002 = vpop.xlane.xlu0 %1001
  %v1003 = vsel %vm936, %v829, -inf
  %1004 = vmax.xlane.f32.xlu0 %v1003
  %v1005 = vpop.xlane.xlu0 %1004
  %v1006 = vsel %vm936, %v832, -inf
  %1007 = vmax.xlane.f32.xlu0 %v1006
  %v1008 = vpop.xlane.xlu0 %1007
  %v1009 = vsel %vm936, %v906, -inf
  %1010 = vmax.xlane.f32.xlu0 %v1009
  %v1011 = vpop.xlane.xlu0 %1010
  %v1012 = vsel %vm936, %v909, -inf
  %1013 = vmax.xlane.f32.xlu0 %v1012
  %v1014 = vpop.xlane.xlu0 %1013
  %v1015 = vsel %vm936, %v914, -inf
  %1016 = vmax.xlane.f32.xlu0 %v1015
  %v1017 = vpop.xlane.xlu0 %1016
  %v1018 = vsel %vm936, %v917, -inf
  %1019 = vmax.xlane.f32.xlu0 %v1018
  %v1020 = vpop.xlane.xlu0 %1019
  %v1021 = vsel %vm936, %v922, -inf
  %1022 = vmax.xlane.f32.xlu0 %v1021
  %v1023 = vpop.xlane.xlu0 %1022
  %v1024 = vsel %vm936, %v925, -inf
  %1025 = vmax.xlane.f32.xlu0 %v1024
  %v1026 = vpop.xlane.xlu0 %1025
  %v1027 = vsel %vm936, %v930, -inf
  %1028 = vmax.xlane.f32.xlu0 %v1027
  %v1029 = vpop.xlane.xlu0 %1028
  %v1030 = vsel %vm936, %v933, -inf
  %1031 = vmax.xlane.f32.xlu0 %v1030
  %v1032 = vpop.xlane.xlu0 %1031
  %v1033 = vsub.f32 %v603, %v939
  %v1034 = vsub.f32 %v606, %v942
  %v1035 = vsub.f32 %v611, %v945
  %v1036 = vsub.f32 %v614, %v948
  %v1037 = vsub.f32 %v619, %v951
  %v1038 = vsub.f32 %v622, %v954
  %v1039 = vsub.f32 %v627, %v957
  %v1040 = vsub.f32 %v630, %v960
  %v1041 = vsub.f32 %v704, %v963
  %v1042 = vsub.f32 %v707, %v966
  %v1043 = vsub.f32 %v712, %v969
  %v1044 = vsub.f32 %v715, %v972
  %v1045 = vsub.f32 %v720, %v975
  %v1046 = vsub.f32 %v723, %v978
  %v1047 = vsub.f32 %v728, %v981
  %v1048 = vsub.f32 %v731, %v984
  %v1049 = vsub.f32 %v805, %v987
  %v1050 = vsub.f32 %v808, %v990
  %v1051 = vsub.f32 %v813, %v993
  %v1052 = vsub.f32 %v816, %v996
  %v1053 = vsub.f32 %v821, %v999
  %v1054 = vsub.f32 %v824, %v1002
  %v1055 = vsub.f32 %v829, %v1005
  %v1056 = vsub.f32 %v832, %v1008
  %v1057 = vsub.f32 %v906, %v1011
  %v1058 = vsub.f32 %v909, %v1014
  %v1059 = vsub.f32 %v914, %v1017
  %v1060 = vsub.f32 %v917, %v1020
  %v1061 = vsub.f32 %v922, %v1023
  %v1062 = vsub.f32 %v925, %v1026
  %v1063 = vsub.f32 %v930, %v1029
  %v1064 = vsub.f32 %v933, %v1032
  %v1065 = vmul.f32 %v1033, 1.442695
  %v1066 = vpow.pop %v1065
  %v1067 = vmul.f32 %v1034, 1.442695
  %v1068 = vpow.pop %v1067
  %v1069 = vmul.f32 %v1035, 1.442695
  %v1070 = vpow.pop %v1069
  %v1071 = vmul.f32 %v1036, 1.442695
  %v1072 = vpow.pop %v1071
  %v1073 = vmul.f32 %v1037, 1.442695
  %v1074 = vpow.pop %v1073
  %v1075 = vmul.f32 %v1038, 1.442695
  %v1076 = vpow.pop %v1075
  %v1077 = vmul.f32 %v1039, 1.442695
  %v1078 = vpow.pop %v1077
  %v1079 = vmul.f32 %v1040, 1.442695
  %v1080 = vpow.pop %v1079
  %v1081 = vmul.f32 %v1041, 1.442695
  %v1082 = vpow.pop %v1081
  %v1083 = vmul.f32 %v1042, 1.442695
  %v1084 = vpow.pop %v1083
  %v1085 = vmul.f32 %v1043, 1.442695
  %v1086 = vpow.pop %v1085
  %v1087 = vmul.f32 %v1044, 1.442695
  %v1088 = vpow.pop %v1087
  %v1089 = vmul.f32 %v1045, 1.442695
  %v1090 = vpow.pop %v1089
  %v1091 = vmul.f32 %v1046, 1.442695
  %v1092 = vpow.pop %v1091
  %v1093 = vmul.f32 %v1047, 1.442695
  %v1094 = vpow.pop %v1093
  %v1095 = vmul.f32 %v1048, 1.442695
  %v1096 = vpow.pop %v1095
  %v1097 = vmul.f32 %v1049, 1.442695
  %v1098 = vpow.pop %v1097
  %v1099 = vmul.f32 %v1050, 1.442695
  %v1100 = vpow.pop %v1099
  %v1101 = vmul.f32 %v1051, 1.442695
  %v1102 = vpow.pop %v1101
  %v1103 = vmul.f32 %v1052, 1.442695
  %v1104 = vpow.pop %v1103
  %v1105 = vmul.f32 %v1053, 1.442695
  %v1106 = vpow.pop %v1105
  %v1107 = vmul.f32 %v1054, 1.442695
  %v1108 = vpow.pop %v1107
  %v1109 = vmul.f32 %v1055, 1.442695
  %v1110 = vpow.pop %v1109
  %v1111 = vmul.f32 %v1056, 1.442695
  %v1112 = vpow.pop %v1111
  %v1113 = vmul.f32 %v1057, 1.442695
  %v1114 = vpow.pop %v1113
  %v1115 = vmul.f32 %v1058, 1.442695
  %v1116 = vpow.pop %v1115
  %v1117 = vmul.f32 %v1059, 1.442695
  %v1118 = vpow.pop %v1117
  %v1119 = vmul.f32 %v1060, 1.442695
  %v1120 = vpow.pop %v1119
  %v1121 = vmul.f32 %v1061, 1.442695
  %v1122 = vpow.pop %v1121
  %v1123 = vmul.f32 %v1062, 1.442695
  %v1124 = vpow.pop %v1123
  %v1125 = vmul.f32 %v1063, 1.442695
  %v1126 = vpow.pop %v1125
  %v1127 = vmul.f32 %v1064, 1.442695
  %v1128 = vpow.pop %v1127
  %v1129 = vsel %vm936, %v1066, 0.0
  %1130 = vadd.xlane.f32.xlu0 %v1129
  %v1131 = vpop.xlane.xlu0 %1130
  %v1132 = vsel %vm936, %v1068, 0.0
  %1133 = vadd.xlane.f32.xlu0 %v1132
  %v1134 = vpop.xlane.xlu0 %1133
  %v1135 = vsel %vm936, %v1070, 0.0
  %1136 = vadd.xlane.f32.xlu0 %v1135
  %v1137 = vpop.xlane.xlu0 %1136
  %v1138 = vsel %vm936, %v1072, 0.0
  %1139 = vadd.xlane.f32.xlu0 %v1138
  %v1140 = vpop.xlane.xlu0 %1139
  %v1141 = vsel %vm936, %v1074, 0.0
  %1142 = vadd.xlane.f32.xlu0 %v1141
  %v1143 = vpop.xlane.xlu0 %1142
  %v1144 = vsel %vm936, %v1076, 0.0
  %1145 = vadd.xlane.f32.xlu0 %v1144
  %v1146 = vpop.xlane.xlu0 %1145
  %v1147 = vsel %vm936, %v1078, 0.0
  %1148 = vadd.xlane.f32.xlu0 %v1147
  %v1149 = vpop.xlane.xlu0 %1148
  %v1150 = vsel %vm936, %v1080, 0.0
  %1151 = vadd.xlane.f32.xlu0 %v1150
  %v1152 = vpop.xlane.xlu0 %1151
  %v1153 = vsel %vm936, %v1082, 0.0
  %1154 = vadd.xlane.f32.xlu0 %v1153
  %v1155 = vpop.xlane.xlu0 %1154
  %v1156 = vsel %vm936, %v1084, 0.0
  %1157 = vadd.xlane.f32.xlu0 %v1156
  %v1158 = vpop.xlane.xlu0 %1157
  %v1159 = vsel %vm936, %v1086, 0.0
  %1160 = vadd.xlane.f32.xlu0 %v1159
  %v1161 = vpop.xlane.xlu0 %1160
  %v1162 = vsel %vm936, %v1088, 0.0
  %1163 = vadd.xlane.f32.xlu0 %v1162
  %v1164 = vpop.xlane.xlu0 %1163
  %v1165 = vsel %vm936, %v1090, 0.0
  %1166 = vadd.xlane.f32.xlu0 %v1165
  %v1167 = vpop.xlane.xlu0 %1166
  %v1168 = vsel %vm936, %v1092, 0.0
  %1169 = vadd.xlane.f32.xlu0 %v1168
  %v1170 = vpop.xlane.xlu0 %1169
  %v1171 = vsel %vm936, %v1094, 0.0
  %1172 = vadd.xlane.f32.xlu0 %v1171
  %v1173 = vpop.xlane.xlu0 %1172
  %v1174 = vsel %vm936, %v1096, 0.0
  %1175 = vadd.xlane.f32.xlu0 %v1174
  %v1176 = vpop.xlane.xlu0 %1175
  %v1177 = vsel %vm936, %v1098, 0.0
  %1178 = vadd.xlane.f32.xlu0 %v1177
  %v1179 = vpop.xlane.xlu0 %1178
  %v1180 = vsel %vm936, %v1100, 0.0
  %1181 = vadd.xlane.f32.xlu0 %v1180
  %v1182 = vpop.xlane.xlu0 %1181
  %v1183 = vsel %vm936, %v1102, 0.0
  %1184 = vadd.xlane.f32.xlu0 %v1183
  %v1185 = vpop.xlane.xlu0 %1184
  %v1186 = vsel %vm936, %v1104, 0.0
  %1187 = vadd.xlane.f32.xlu0 %v1186
  %v1188 = vpop.xlane.xlu0 %1187
  %v1189 = vsel %vm936, %v1106, 0.0
  %1190 = vadd.xlane.f32.xlu0 %v1189
  %v1191 = vpop.xlane.xlu0 %1190
  %v1192 = vsel %vm936, %v1108, 0.0
  %1193 = vadd.xlane.f32.xlu0 %v1192
  %v1194 = vpop.xlane.xlu0 %1193
  %v1195 = vsel %vm936, %v1110, 0.0
  %1196 = vadd.xlane.f32.xlu0 %v1195
  %v1197 = vpop.xlane.xlu0 %1196
  %v1198 = vsel %vm936, %v1112, 0.0
  %1199 = vadd.xlane.f32.xlu0 %v1198
  %v1200 = vpop.xlane.xlu0 %1199
  %v1201 = vsel %vm936, %v1114, 0.0
  %1202 = vadd.xlane.f32.xlu0 %v1201
  %v1203 = vpop.xlane.xlu0 %1202
  %v1204 = vsel %vm936, %v1116, 0.0
  %1205 = vadd.xlane.f32.xlu0 %v1204
  %v1206 = vpop.xlane.xlu0 %1205
  %v1207 = vsel %vm936, %v1118, 0.0
  %1208 = vadd.xlane.f32.xlu0 %v1207
  %v1209 = vpop.xlane.xlu0 %1208
  %v1210 = vsel %vm936, %v1120, 0.0
  %1211 = vadd.xlane.f32.xlu0 %v1210
  %v1212 = vpop.xlane.xlu0 %1211
  %v1213 = vsel %vm936, %v1122, 0.0
  %1214 = vadd.xlane.f32.xlu0 %v1213
  %v1215 = vpop.xlane.xlu0 %1214
  %v1216 = vsel %vm936, %v1124, 0.0
  %1217 = vadd.xlane.f32.xlu0 %v1216
  %v1218 = vpop.xlane.xlu0 %1217
  %v1219 = vsel %vm936, %v1126, 0.0
  %1220 = vadd.xlane.f32.xlu0 %v1219
  %v1221 = vpop.xlane.xlu0 %1220
  %v1222 = vsel %vm936, %v1128, 0.0
  %1223 = vadd.xlane.f32.xlu0 %v1222
  %v1224 = vpop.xlane.xlu0 %1223
  %v1225 = vrcp.pop %v1131
  %v1226 = vrcp.pop %v1134
  %v1227 = vrcp.pop %v1137
  %v1228 = vrcp.pop %v1140
  %v1229 = vrcp.pop %v1143
  %v1230 = vrcp.pop %v1146
  %v1231 = vrcp.pop %v1149
  %v1232 = vrcp.pop %v1152
  %v1233 = vrcp.pop %v1155
  %v1234 = vrcp.pop %v1158
  %v1235 = vrcp.pop %v1161
  %v1236 = vrcp.pop %v1164
  %v1237 = vrcp.pop %v1167
  %v1238 = vrcp.pop %v1170
  %v1239 = vrcp.pop %v1173
  %v1240 = vrcp.pop %v1176
  %v1241 = vrcp.pop %v1179
  %v1242 = vrcp.pop %v1182
  %v1243 = vrcp.pop %v1185
  %v1244 = vrcp.pop %v1188
  %v1245 = vrcp.pop %v1191
  %v1246 = vrcp.pop %v1194
  %v1247 = vrcp.pop %v1197
  %v1248 = vrcp.pop %v1200
  %v1249 = vrcp.pop %v1203
  %v1250 = vrcp.pop %v1206
  %v1251 = vrcp.pop %v1209
  %v1252 = vrcp.pop %v1212
  %v1253 = vrcp.pop %v1215
  %v1254 = vrcp.pop %v1218
  %v1255 = vrcp.pop %v1221
  %v1256 = vrcp.pop %v1224
  %v1257 = vpack.c.bf16 %v1068, %v1066
  %v1258 = vpack.c.bf16 %v1072, %v1070
  %v1259 = vpack.c.bf16 %v1076, %v1074
  %v1260 = vpack.c.bf16 %v1080, %v1078
  %v1261 = vpack.c.bf16 %v1084, %v1082
  %v1262 = vpack.c.bf16 %v1088, %v1086
  %v1263 = vpack.c.bf16 %v1092, %v1090
  %v1264 = vpack.c.bf16 %v1096, %v1094
  %v1265 = vpack.c.bf16 %v1100, %v1098
  %v1266 = vpack.c.bf16 %v1104, %v1102
  %v1267 = vpack.c.bf16 %v1108, %v1106
  %v1268 = vpack.c.bf16 %v1112, %v1110
  %v1269 = vpack.c.bf16 %v1116, %v1114
  %v1270 = vpack.c.bf16 %v1120, %v1118
  %v1271 = vpack.c.bf16 %v1124, %v1122
  %v1272 = vpack.c.bf16 %v1128, %v1126
  %1273 = vrot.lane.b32.xlu0 %v515, 64
  %v1274 = vpop.permute.xlu0 %1273
  %1275 = vrot.lane.b32.xlu0 %v516, 64
  %v1276 = vpop.permute.xlu0 %1275
  %1277 = vrot.lane.b32.xlu0 %v517, 64
  %v1278 = vpop.permute.xlu0 %1277
  %1279 = vrot.lane.b32.xlu0 %v518, 64
  %v1280 = vpop.permute.xlu0 %1279
  %v1286 = vsel %vm936, %v1257, 0
  %v1289 = vsel %vm936, %v1258, 0
  %v1292 = vsel %vm936, %v1259, 0
  %v1295 = vsel %vm936, %v1260, 0
  %1297 = vmatprep.subr.bf16.mxu0 0
  %1298 = vmatpush1.bf16.msra.mxu0 0
  %1299 = vmatprep.subr.bf16.mxu0 0
  %1300 = vmatpush1.bf16.msra.mxu0 0
  %1301 = vmatprep.subr.bf16.mxu0 0
  %1302 = vmatpush1.bf16.msra.mxu0 0
  %1303 = vmatprep.subr.bf16.mxu0 0
  %1304 = vmatpush1.bf16.msra.mxu0 0
  %1305 = vmatprep.subr.bf16.mxu0 0
  %1306 = vmatpush1.bf16.msra.mxu0 %v1280
  %1307 = vmatprep.subr.bf16.mxu0 0
  %1308 = vmatpush1.bf16.msra.mxu0 %v1278
  %1309 = vmatprep.subr.bf16.mxu0 0
  %1310 = vmatpush1.bf16.msra.mxu0 %v1276
  %1311 = vmatprep.subr.bf16.mxu0 0
  %1312 = vmatpush1.bf16.msra.mxu0 %v1274
  %1313 = vmatprep.subr.bf16.mxu0 0
  %1314 = vmatpush2.bf16.msra.mxu0 0
  %1315 = vmatprep.subr.bf16.mxu0 0
  %1316 = vmatpush2.bf16.msra.mxu0 0
  %1317 = vmatprep.subr.bf16.mxu0 0
  %1318 = vmatpush2.bf16.msra.mxu0 0
  %1319 = vmatprep.subr.bf16.mxu0 0
  %1320 = vmatpush2.bf16.msra.mxu0 0
  %1321 = vmatprep.subr.bf16.mxu0 0
  %1322 = vmatpush2.bf16.msra.mxu0 0
  %1323 = vmatprep.subr.bf16.mxu0 0
  %1324 = vmatpush2.bf16.msra.mxu0 0
  %1325 = vmatprep.subr.bf16.mxu0 0
  %1326 = vmatpush2.bf16.msra.mxu0 0
  %1327 = vmatprep.subr.bf16.mxu0 0
  %1328 = vmatpush2.bf16.msra.mxu0 0
  %1329 = vmatprep.mubr.bf16.mxu0 0
  %1330 = vmatmul.mubr.bf16.gmra.mxu0 %v1286
  %v1331 = vpop.f32.mrf.mxu0
  %v1332 = vadd.f32 0.0, %v1331
  %v1333 = vpop.f32.mrf.mxu0
  %v1334 = vpop.f32.mrf.mxu0
  %v1335 = vadd.f32 0.0, %v1334
  %v1336 = vpop.f32.mrf.mxu0
  %1337 = vmatprep.mubr.bf16.mxu0 0
  %1338 = vmatmul.mubr.bf16.gmra.mxu0 %v1289
  %v1339 = vpop.f32.mrf.mxu0
  %v1340 = vadd.f32 0.0, %v1339
  %v1341 = vpop.f32.mrf.mxu0
  %v1342 = vpop.f32.mrf.mxu0
  %v1343 = vadd.f32 0.0, %v1342
  %v1344 = vpop.f32.mrf.mxu0
  %1345 = vmatprep.mubr.bf16.mxu0 0
  %1346 = vmatmul.mubr.bf16.gmra.mxu0 %v1292
  %v1347 = vpop.f32.mrf.mxu0
  %v1348 = vadd.f32 0.0, %v1347
  %v1349 = vpop.f32.mrf.mxu0
  %v1350 = vpop.f32.mrf.mxu0
  %v1351 = vadd.f32 0.0, %v1350
  %v1352 = vpop.f32.mrf.mxu0
  %1353 = vmatprep.mubr.bf16.mxu0 0
  %1354 = vmatmul.mubr.bf16.gmra.mxu0 %v1295
  %v1355 = vpop.f32.mrf.mxu0
  %v1356 = vadd.f32 0.0, %v1355
  %v1357 = vpop.f32.mrf.mxu0
  %v1358 = vpop.f32.mrf.mxu0
  %v1359 = vadd.f32 0.0, %v1358
  %v1360 = vpop.f32.mrf.mxu0
  %1361 = vdwg.mxu0
  %1362 = vrot.lane.b32.xlu0 %v519, 64
  %v1363 = vpop.permute.xlu0 %1362
  %1364 = vrot.lane.b32.xlu0 %v520, 64
  %v1365 = vpop.permute.xlu0 %1364
  %1366 = vrot.lane.b32.xlu0 %v521, 64
  %v1367 = vpop.permute.xlu0 %1366
  %1368 = vrot.lane.b32.xlu0 %v522, 64
  %v1369 = vpop.permute.xlu0 %1368
  %v1375 = vsel %vm936, %v1261, 0
  %v1378 = vsel %vm936, %v1262, 0
  %v1381 = vsel %vm936, %v1263, 0
  %v1384 = vsel %vm936, %v1264, 0
  %1386 = vmatprep.subr.bf16.mxu0 0
  %1387 = vmatpush1.bf16.msra.mxu0 0
  %1388 = vmatprep.subr.bf16.mxu0 0
  %1389 = vmatpush1.bf16.msra.mxu0 0
  %1390 = vmatprep.subr.bf16.mxu0 0
  %1391 = vmatpush1.bf16.msra.mxu0 0
  %1392 = vmatprep.subr.bf16.mxu0 0
  %1393 = vmatpush1.bf16.msra.mxu0 0
  %1394 = vmatprep.subr.bf16.mxu0 0
  %1395 = vmatpush1.bf16.msra.mxu0 %v1369
  %1396 = vmatprep.subr.bf16.mxu0 0
  %1397 = vmatpush1.bf16.msra.mxu0 %v1367
  %1398 = vmatprep.subr.bf16.mxu0 0
  %1399 = vmatpush1.bf16.msra.mxu0 %v1365
  %1400 = vmatprep.subr.bf16.mxu0 0
  %1401 = vmatpush1.bf16.msra.mxu0 %v1363
  %1402 = vmatprep.subr.bf16.mxu0 0
  %1403 = vmatpush2.bf16.msra.mxu0 0
  %1404 = vmatprep.subr.bf16.mxu0 0
  %1405 = vmatpush2.bf16.msra.mxu0 0
  %1406 = vmatprep.subr.bf16.mxu0 0
  %1407 = vmatpush2.bf16.msra.mxu0 0
  %1408 = vmatprep.subr.bf16.mxu0 0
  %1409 = vmatpush2.bf16.msra.mxu0 0
  %1410 = vmatprep.subr.bf16.mxu0 0
  %1411 = vmatpush2.bf16.msra.mxu0 0
  %1412 = vmatprep.subr.bf16.mxu0 0
  %1413 = vmatpush2.bf16.msra.mxu0 0
  %1414 = vmatprep.subr.bf16.mxu0 0
  %1415 = vmatpush2.bf16.msra.mxu0 0
  %1416 = vmatprep.subr.bf16.mxu0 0
  %1417 = vmatpush2.bf16.msra.mxu0 0
  %1418 = vmatprep.mubr.bf16.mxu0 0
  %1419 = vmatmul.mubr.bf16.gmra.mxu0 %v1375
  %v1420 = vpop.f32.mrf.mxu0
  %v1421 = vadd.f32 0.0, %v1420
  %v1422 = vpop.f32.mrf.mxu0
  %v1423 = vpop.f32.mrf.mxu0
  %v1424 = vadd.f32 0.0, %v1423
  %v1425 = vpop.f32.mrf.mxu0
  %1426 = vmatprep.mubr.bf16.mxu0 0
  %1427 = vmatmul.mubr.bf16.gmra.mxu0 %v1378
  %v1428 = vpop.f32.mrf.mxu0
  %v1429 = vadd.f32 0.0, %v1428
  %v1430 = vpop.f32.mrf.mxu0
  %v1431 = vpop.f32.mrf.mxu0
  %v1432 = vadd.f32 0.0, %v1431
  %v1433 = vpop.f32.mrf.mxu0
  %1434 = vmatprep.mubr.bf16.mxu0 0
  %1435 = vmatmul.mubr.bf16.gmra.mxu0 %v1381
  %v1436 = vpop.f32.mrf.mxu0
  %v1437 = vadd.f32 0.0, %v1436
  %v1438 = vpop.f32.mrf.mxu0
  %v1439 = vpop.f32.mrf.mxu0
  %v1440 = vadd.f32 0.0, %v1439
  %v1441 = vpop.f32.mrf.mxu0
  %1442 = vmatprep.mubr.bf16.mxu0 0
  %1443 = vmatmul.mubr.bf16.gmra.mxu0 %v1384
  %v1444 = vpop.f32.mrf.mxu0
  %v1445 = vadd.f32 0.0, %v1444
  %v1446 = vpop.f32.mrf.mxu0
  %v1447 = vpop.f32.mrf.mxu0
  %v1448 = vadd.f32 0.0, %v1447
  %v1449 = vpop.f32.mrf.mxu0
  %1450 = vdwg.mxu0
  %1451 = vrot.lane.b32.xlu0 %v523, 64
  %v1452 = vpop.permute.xlu0 %1451
  %1453 = vrot.lane.b32.xlu0 %v524, 64
  %v1454 = vpop.permute.xlu0 %1453
  %1455 = vrot.lane.b32.xlu0 %v525, 64
  %v1456 = vpop.permute.xlu0 %1455
  %1457 = vrot.lane.b32.xlu0 %v526, 64
  %v1458 = vpop.permute.xlu0 %1457
  %v1464 = vsel %vm936, %v1265, 0
  %v1467 = vsel %vm936, %v1266, 0
  %v1470 = vsel %vm936, %v1267, 0
  %v1473 = vsel %vm936, %v1268, 0
  %1475 = vmatprep.subr.bf16.mxu0 0
  %1476 = vmatpush1.bf16.msra.mxu0 0
  %1477 = vmatprep.subr.bf16.mxu0 0
  %1478 = vmatpush1.bf16.msra.mxu0 0
  %1479 = vmatprep.subr.bf16.mxu0 0
  %1480 = vmatpush1.bf16.msra.mxu0 0
  %1481 = vmatprep.subr.bf16.mxu0 0
  %1482 = vmatpush1.bf16.msra.mxu0 0
  %1483 = vmatprep.subr.bf16.mxu0 0
  %1484 = vmatpush1.bf16.msra.mxu0 %v1458
  %1485 = vmatprep.subr.bf16.mxu0 0
  %1486 = vmatpush1.bf16.msra.mxu0 %v1456
  %1487 = vmatprep.subr.bf16.mxu0 0
  %1488 = vmatpush1.bf16.msra.mxu0 %v1454
  %1489 = vmatprep.subr.bf16.mxu0 0
  %1490 = vmatpush1.bf16.msra.mxu0 %v1452
  %1491 = vmatprep.subr.bf16.mxu0 0
  %1492 = vmatpush2.bf16.msra.mxu0 0
  %1493 = vmatprep.subr.bf16.mxu0 0
  %1494 = vmatpush2.bf16.msra.mxu0 0
  %1495 = vmatprep.subr.bf16.mxu0 0
  %1496 = vmatpush2.bf16.msra.mxu0 0
  %1497 = vmatprep.subr.bf16.mxu0 0
  %1498 = vmatpush2.bf16.msra.mxu0 0
  %1499 = vmatprep.subr.bf16.mxu0 0
  %1500 = vmatpush2.bf16.msra.mxu0 0
  %1501 = vmatprep.subr.bf16.mxu0 0
  %1502 = vmatpush2.bf16.msra.mxu0 0
  %1503 = vmatprep.subr.bf16.mxu0 0
  %1504 = vmatpush2.bf16.msra.mxu0 0
  %1505 = vmatprep.subr.bf16.mxu0 0
  %1506 = vmatpush2.bf16.msra.mxu0 0
  %1507 = vmatprep.mubr.bf16.mxu0 0
  %1508 = vmatmul.mubr.bf16.gmra.mxu0 %v1464
  %v1509 = vpop.f32.mrf.mxu0
  %v1510 = vadd.f32 0.0, %v1509
  %v1511 = vpop.f32.mrf.mxu0
  %v1512 = vpop.f32.mrf.mxu0
  %v1513 = vadd.f32 0.0, %v1512
  %v1514 = vpop.f32.mrf.mxu0
  %1515 = vmatprep.mubr.bf16.mxu0 0
  %1516 = vmatmul.mubr.bf16.gmra.mxu0 %v1467
  %v1517 = vpop.f32.mrf.mxu0
  %v1518 = vadd.f32 0.0, %v1517
  %v1519 = vpop.f32.mrf.mxu0
  %v1520 = vpop.f32.mrf.mxu0
  %v1521 = vadd.f32 0.0, %v1520
  %v1522 = vpop.f32.mrf.mxu0
  %1523 = vmatprep.mubr.bf16.mxu0 0
  %1524 = vmatmul.mubr.bf16.gmra.mxu0 %v1470
  %v1525 = vpop.f32.mrf.mxu0
  %v1526 = vadd.f32 0.0, %v1525
  %v1527 = vpop.f32.mrf.mxu0
  %v1528 = vpop.f32.mrf.mxu0
  %v1529 = vadd.f32 0.0, %v1528
  %v1530 = vpop.f32.mrf.mxu0
  %1531 = vmatprep.mubr.bf16.mxu0 0
  %1532 = vmatmul.mubr.bf16.gmra.mxu0 %v1473
  %v1533 = vpop.f32.mrf.mxu0
  %v1534 = vadd.f32 0.0, %v1533
  %v1535 = vpop.f32.mrf.mxu0
  %v1536 = vpop.f32.mrf.mxu0
  %v1537 = vadd.f32 0.0, %v1536
  %v1538 = vpop.f32.mrf.mxu0
  %1539 = vdwg.mxu0
  %1540 = vrot.lane.b32.xlu0 %v527, 64
  %v1541 = vpop.permute.xlu0 %1540
  %1542 = vrot.lane.b32.xlu0 %v528, 64
  %v1543 = vpop.permute.xlu0 %1542
  %1544 = vrot.lane.b32.xlu0 %v529, 64
  %v1545 = vpop.permute.xlu0 %1544
  %1546 = vrot.lane.b32.xlu0 %v530, 64
  %v1547 = vpop.permute.xlu0 %1546
  %v1553 = vsel %vm936, %v1269, 0
  %v1556 = vsel %vm936, %v1270, 0
  %v1559 = vsel %vm936, %v1271, 0
  %v1562 = vsel %vm936, %v1272, 0
  %1564 = vmatprep.subr.bf16.mxu0 0
  %1565 = vmatpush1.bf16.msra.mxu0 0
  %1566 = vmatprep.subr.bf16.mxu0 0
  %1567 = vmatpush1.bf16.msra.mxu0 0
  %1568 = vmatprep.subr.bf16.mxu0 0
  %1569 = vmatpush1.bf16.msra.mxu0 0
  %1570 = vmatprep.subr.bf16.mxu0 0
  %1571 = vmatpush1.bf16.msra.mxu0 0
  %1572 = vmatprep.subr.bf16.mxu0 0
  %1573 = vmatpush1.bf16.msra.mxu0 %v1547
  %1574 = vmatprep.subr.bf16.mxu0 0
  %1575 = vmatpush1.bf16.msra.mxu0 %v1545
  %1576 = vmatprep.subr.bf16.mxu0 0
  %1577 = vmatpush1.bf16.msra.mxu0 %v1543
  %1578 = vmatprep.subr.bf16.mxu0 0
  %1579 = vmatpush1.bf16.msra.mxu0 %v1541
  %1580 = vmatprep.subr.bf16.mxu0 0
  %1581 = vmatpush2.bf16.msra.mxu0 0
  %1582 = vmatprep.subr.bf16.mxu0 0
  %1583 = vmatpush2.bf16.msra.mxu0 0
  %1584 = vmatprep.subr.bf16.mxu0 0
  %1585 = vmatpush2.bf16.msra.mxu0 0
  %1586 = vmatprep.subr.bf16.mxu0 0
  %1587 = vmatpush2.bf16.msra.mxu0 0
  %1588 = vmatprep.subr.bf16.mxu0 0
  %1589 = vmatpush2.bf16.msra.mxu0 0
  %1590 = vmatprep.subr.bf16.mxu0 0
  %1591 = vmatpush2.bf16.msra.mxu0 0
  %1592 = vmatprep.subr.bf16.mxu0 0
  %1593 = vmatpush2.bf16.msra.mxu0 0
  %1594 = vmatprep.subr.bf16.mxu0 0
  %1595 = vmatpush2.bf16.msra.mxu0 0
  %1596 = vmatprep.mubr.bf16.mxu0 0
  %1597 = vmatmul.mubr.bf16.gmra.mxu0 %v1553
  %v1598 = vpop.f32.mrf.mxu0
  %v1599 = vadd.f32 0.0, %v1598
  %v1600 = vpop.f32.mrf.mxu0
  %v1601 = vpop.f32.mrf.mxu0
  %v1602 = vadd.f32 0.0, %v1601
  %v1603 = vpop.f32.mrf.mxu0
  %1604 = vmatprep.mubr.bf16.mxu0 0
  %1605 = vmatmul.mubr.bf16.gmra.mxu0 %v1556
  %v1606 = vpop.f32.mrf.mxu0
  %v1607 = vadd.f32 0.0, %v1606
  %v1608 = vpop.f32.mrf.mxu0
  %v1609 = vpop.f32.mrf.mxu0
  %v1610 = vadd.f32 0.0, %v1609
  %v1611 = vpop.f32.mrf.mxu0
  %1612 = vmatprep.mubr.bf16.mxu0 0
  %1613 = vmatmul.mubr.bf16.gmra.mxu0 %v1559
  %v1614 = vpop.f32.mrf.mxu0
  %v1615 = vadd.f32 0.0, %v1614
  %v1616 = vpop.f32.mrf.mxu0
  %v1617 = vpop.f32.mrf.mxu0
  %v1618 = vadd.f32 0.0, %v1617
  %v1619 = vpop.f32.mrf.mxu0
  %1620 = vmatprep.mubr.bf16.mxu0 0
  %1621 = vmatmul.mubr.bf16.gmra.mxu0 %v1562
  %v1622 = vpop.f32.mrf.mxu0
  %v1623 = vadd.f32 0.0, %v1622
  %v1624 = vpop.f32.mrf.mxu0
  %v1625 = vpop.f32.mrf.mxu0
  %v1626 = vadd.f32 0.0, %v1625
  %v1627 = vpop.f32.mrf.mxu0
  %1628 = vdwg.mxu0
  %v1629 = vmul.f32 %v1332, %v1225
  %v1630 = vmul.f32 %v1335, %v1226
  %v1631 = vmul.f32 %v1340, %v1227
  %v1632 = vmul.f32 %v1343, %v1228
  %v1633 = vmul.f32 %v1348, %v1229
  %v1634 = vmul.f32 %v1351, %v1230
  %v1635 = vmul.f32 %v1356, %v1231
  %v1636 = vmul.f32 %v1359, %v1232
  %v1637 = vmul.f32 %v1421, %v1233
  %v1638 = vmul.f32 %v1424, %v1234
  %v1639 = vmul.f32 %v1429, %v1235
  %v1640 = vmul.f32 %v1432, %v1236
  %v1641 = vmul.f32 %v1437, %v1237
  %v1642 = vmul.f32 %v1440, %v1238
  %v1643 = vmul.f32 %v1445, %v1239
  %v1644 = vmul.f32 %v1448, %v1240
  %v1645 = vmul.f32 %v1510, %v1241
  %v1646 = vmul.f32 %v1513, %v1242
  %v1647 = vmul.f32 %v1518, %v1243
  %v1648 = vmul.f32 %v1521, %v1244
  %v1649 = vmul.f32 %v1526, %v1245
  %v1650 = vmul.f32 %v1529, %v1246
  %v1651 = vmul.f32 %v1534, %v1247
  %v1652 = vmul.f32 %v1537, %v1248
  %v1653 = vmul.f32 %v1599, %v1249
  %v1654 = vmul.f32 %v1602, %v1250
  %v1655 = vmul.f32 %v1607, %v1251
  %v1656 = vmul.f32 %v1610, %v1252
  %v1657 = vmul.f32 %v1615, %v1253
  %v1658 = vmul.f32 %v1618, %v1254
  %v1659 = vmul.f32 %v1623, %v1255
  %v1660 = vmul.f32 %v1626, %v1256
  %1661 = vst.msk [vmem:[#allocation2] sm:$0xff] %vm543, %v1629
  %1662 = vst.msk [vmem:[#allocation2 + $0x8] sm:$0xff] %vm543, %v1630
  %1663 = vst.msk [vmem:[#allocation2 + $0x10] sm:$0xff] %vm543, %v1631
  %1664 = vst.msk [vmem:[#allocation2 + $0x18] sm:$0xff] %vm543, %v1632
  %1665 = vst.msk [vmem:[#allocation2 + $0x20] sm:$0xff] %vm543, %v1633
  %1666 = vst.msk [vmem:[#allocation2 + $0x28] sm:$0xff] %vm543, %v1634
  %1667 = vst.msk [vmem:[#allocation2 + $0x30] sm:$0xff] %vm543, %v1635
  %1668 = vst.msk [vmem:[#allocation2 + $0x38] sm:$0xff] %vm543, %v1636
  %1669 = vst.msk [vmem:[#allocation2 + $0x40] sm:$0xff] %vm543, %v1637
  %1670 = vst.msk [vmem:[#allocation2 + $0x48] sm:$0xff] %vm543, %v1638
  %1671 = vst.msk [vmem:[#allocation2 + $0x50] sm:$0xff] %vm543, %v1639
  %1672 = vst.msk [vmem:[#allocation2 + $0x58] sm:$0xff] %vm543, %v1640
  %1673 = vst.msk [vmem:[#allocation2 + $0x60] sm:$0xff] %vm543, %v1641
  %1674 = vst.msk [vmem:[#allocation2 + $0x68] sm:$0xff] %vm543, %v1642
  %1675 = vst.msk [vmem:[#allocation2 + $0x70] sm:$0xff] %vm543, %v1643
  %1676 = vst.msk [vmem:[#allocation2 + $0x78] sm:$0xff] %vm543, %v1644
  %1693 = vrot.lane.b32.xlu0 %v1645, 16
  %v1694 = vpop.permute.xlu0 %1693
  %1695 = vrot.lane.b32.xlu0 %v1646, 16
  %v1696 = vpop.permute.xlu0 %1695
  %1697 = vrot.lane.b32.xlu0 %v1647, 16
  %v1698 = vpop.permute.xlu0 %1697
  %1699 = vrot.lane.b32.xlu0 %v1648, 16
  %v1700 = vpop.permute.xlu0 %1699
  %1701 = vrot.lane.b32.xlu0 %v1649, 16
  %v1702 = vpop.permute.xlu0 %1701
  %1703 = vrot.lane.b32.xlu0 %v1650, 16
  %v1704 = vpop.permute.xlu0 %1703
  %1705 = vrot.lane.b32.xlu0 %v1651, 16
  %v1706 = vpop.permute.xlu0 %1705
  %1707 = vrot.lane.b32.xlu0 %v1652, 16
  %v1708 = vpop.permute.xlu0 %1707
  %1709 = vrot.lane.b32.xlu0 %v1653, 16
  %v1710 = vpop.permute.xlu0 %1709
  %1711 = vrot.lane.b32.xlu0 %v1654, 16
  %v1712 = vpop.permute.xlu0 %1711
  %1713 = vrot.lane.b32.xlu0 %v1655, 16
  %v1714 = vpop.permute.xlu0 %1713
  %1715 = vrot.lane.b32.xlu0 %v1656, 16
  %v1716 = vpop.permute.xlu0 %1715
  %1717 = vrot.lane.b32.xlu0 %v1657, 16
  %v1718 = vpop.permute.xlu0 %1717
  %1719 = vrot.lane.b32.xlu0 %v1658, 16
  %v1720 = vpop.permute.xlu0 %1719
  %1721 = vrot.lane.b32.xlu0 %v1659, 16
  %v1722 = vpop.permute.xlu0 %1721
  %1723 = vrot.lane.b32.xlu0 %v1660, 16
  %v1724 = vpop.permute.xlu0 %1723
  %vm1741 = vcmask 261248
  %1742 = vst.msk [vmem:[#allocation2] sm:$0xff] %vm1741, %v1694
  %1743 = vst.msk [vmem:[#allocation2 + $0x8] sm:$0xff] %vm1741, %v1696
  %1744 = vst.msk [vmem:[#allocation2 + $0x10] sm:$0xff] %vm1741, %v1698
  %1745 = vst.msk [vmem:[#allocation2 + $0x18] sm:$0xff] %vm1741, %v1700
  %1746 = vst.msk [vmem:[#allocation2 + $0x20] sm:$0xff] %vm1741, %v1702
  %1747 = vst.msk [vmem:[#allocation2 + $0x28] sm:$0xff] %vm1741, %v1704
  %1748 = vst.msk [vmem:[#allocation2 + $0x30] sm:$0xff] %vm1741, %v1706
  %1749 = vst.msk [vmem:[#allocation2 + $0x38] sm:$0xff] %vm1741, %v1708
  %1750 = vst.msk [vmem:[#allocation2 + $0x40] sm:$0xff] %vm1741, %v1710
  %1751 = vst.msk [vmem:[#allocation2 + $0x48] sm:$0xff] %vm1741, %v1712
  %1752 = vst.msk [vmem:[#allocation2 + $0x50] sm:$0xff] %vm1741, %v1714
  %1753 = vst.msk [vmem:[#allocation2 + $0x58] sm:$0xff] %vm1741, %v1716
  %1754 = vst.msk [vmem:[#allocation2 + $0x60] sm:$0xff] %vm1741, %v1718
  %1755 = vst.msk [vmem:[#allocation2 + $0x68] sm:$0xff] %vm1741, %v1720
  %1756 = vst.msk [vmem:[#allocation2 + $0x70] sm:$0xff] %vm1741, %v1722
  %1757 = vst.msk [vmem:[#allocation2 + $0x78] sm:$0xff] %vm1741, %v1724
  %v1758 = vld [vmem:[#allocation2] sm:$0xff]
  %v1759 = vld [vmem:[#allocation2 + $0x8] sm:$0xff]
  %v1760 = vld [vmem:[#allocation2 + $0x10] sm:$0xff]
  %v1761 = vld [vmem:[#allocation2 + $0x18] sm:$0xff]
  %v1762 = vld [vmem:[#allocation2 + $0x20] sm:$0xff]
  %v1763 = vld [vmem:[#allocation2 + $0x28] sm:$0xff]
  %v1764 = vld [vmem:[#allocation2 + $0x30] sm:$0xff]
  %v1765 = vld [vmem:[#allocation2 + $0x38] sm:$0xff]
  %v1766 = vld [vmem:[#allocation2 + $0x40] sm:$0xff]
  %v1767 = vld [vmem:[#allocation2 + $0x48] sm:$0xff]
  %v1768 = vld [vmem:[#allocation2 + $0x50] sm:$0xff]
  %v1769 = vld [vmem:[#allocation2 + $0x58] sm:$0xff]
  %v1770 = vld [vmem:[#allocation2 + $0x60] sm:$0xff]
  %v1771 = vld [vmem:[#allocation2 + $0x68] sm:$0xff]
  %v1772 = vld [vmem:[#allocation2 + $0x70] sm:$0xff]
  %v1773 = vld [vmem:[#allocation2 + $0x78] sm:$0xff]
  %v1774 = vpack.c.bf16 %v1759, %v1758
  %v1775 = vpack.c.bf16 %v1761, %v1760
  %v1776 = vpack.c.bf16 %v1763, %v1762
  %v1777 = vpack.c.bf16 %v1765, %v1764
  %v1778 = vpack.c.bf16 %v1767, %v1766
  %v1779 = vpack.c.bf16 %v1769, %v1768
  %v1780 = vpack.c.bf16 %v1771, %v1770
  %v1781 = vpack.c.bf16 %v1773, %v1772
  %v1782 = vld [vmem:[%s5] sm:$0xf]
  %v1783 = vld [vmem:[%s5 + $0x4] sm:$0xf]
  %v1784 = vld [vmem:[%s5 + $0x8] sm:$0xf]
  %v1785 = vld [vmem:[%s5 + $0xc] sm:$0xf]
  %v1786 = vld [vmem:[%s6] sm:$0x1]
  %v1788 = vlaneseq
  %v1789 = vshrl.u32 %v1788, 7
  %v1790 = vsub.s32 0, %v1789
  %v1791 = vrot.slane %v1786, %v1790
  %v1797 = vunpack.c.l.b16 %v1782
  %v1798 = vunpack.c.l.b16 %v1783
  %v1799 = vunpack.c.l.b16 %v1784
  %v1800 = vunpack.c.l.b16 %v1785
  %v1801 = vpack.c.b16 %v1798, %v1797
  %v1802 = vpack.c.b16 %v1800, %v1799
  %v1806 = vsel %vm43, %v1774, 0
  %v1809 = vsel %vm43, %v1775, 0
  %v1812 = vsel %vm43, %v1776, 0
  %v1815 = vsel %vm43, %v1777, 0
  %v1818 = vsel %vm43, %v1778, 0
  %v1821 = vsel %vm43, %v1779, 0
  %v1824 = vsel %vm43, %v1780, 0
  %v1827 = vsel %vm43, %v1781, 0
  %1829 = vmatprep.subr.bf16.mxu0 0
  %1830 = vmatpush1.bf16.msra.mxu0 0
  %1831 = vmatprep.subr.bf16.mxu0 0
  %1832 = vmatpush1.bf16.msra.mxu0 0
  %1833 = vmatprep.subr.bf16.mxu0 0
  %1834 = vmatpush1.bf16.msra.mxu0 0
  %1835 = vmatprep.subr.bf16.mxu0 0
  %1836 = vmatpush1.bf16.msra.mxu0 0
  %1837 = vmatprep.subr.bf16.mxu0 0
  %1838 = vmatpush1.bf16.msra.mxu0 0
  %1839 = vmatprep.subr.bf16.mxu0 0
  %1840 = vmatpush1.bf16.msra.mxu0 0
  %1841 = vmatprep.subr.bf16.mxu0 0
  %1842 = vmatpush1.bf16.msra.mxu0 %v1802
  %1843 = vmatprep.subr.bf16.mxu0 0
  %1844 = vmatpush1.bf16.msra.mxu0 %v1801
  %1845 = vmatprep.subr.bf16.mxu0 0
  %1846 = vmatpush2.bf16.msra.mxu0 0
  %1847 = vmatprep.subr.bf16.mxu0 0
  %1848 = vmatpush2.bf16.msra.mxu0 0
  %1849 = vmatprep.subr.bf16.mxu0 0
  %1850 = vmatpush2.bf16.msra.mxu0 0
  %1851 = vmatprep.subr.bf16.mxu0 0
  %1852 = vmatpush2.bf16.msra.mxu0 0
  %1853 = vmatprep.subr.bf16.mxu0 0
  %1854 = vmatpush2.bf16.msra.mxu0 0
  %1855 = vmatprep.subr.bf16.mxu0 0
  %1856 = vmatpush2.bf16.msra.mxu0 0
  %1857 = vmatprep.subr.bf16.mxu0 0
  %1858 = vmatpush2.bf16.msra.mxu0 0
  %1859 = vmatprep.subr.bf16.mxu0 0
  %1860 = vmatpush2.bf16.msra.mxu0 0
  %1861 = vmatprep.mubr.bf16.mxu0 0
  %1862 = vmatmul.mubr.bf16.gmra.mxu0 %v1806
  %v1863 = vpop.f32.mrf.mxu0
  %v1864 = vadd.f32 %v1791, %v1863
  %v1865 = vpop.f32.mrf.mxu0
  %v1866 = vpop.f32.mrf.mxu0
  %v1867 = vadd.f32 %v1791, %v1866
  %v1868 = vpop.f32.mrf.mxu0
  %1869 = vmatprep.mubr.bf16.mxu0 0
  %1870 = vmatmul.mubr.bf16.gmra.mxu0 %v1809
  %v1871 = vpop.f32.mrf.mxu0
  %v1872 = vadd.f32 %v1791, %v1871
  %v1873 = vpop.f32.mrf.mxu0
  %v1874 = vpop.f32.mrf.mxu0
  %v1875 = vadd.f32 %v1791, %v1874
  %v1876 = vpop.f32.mrf.mxu0
  %1877 = vmatprep.mubr.bf16.mxu0 0
  %1878 = vmatmul.mubr.bf16.gmra.mxu0 %v1812
  %v1879 = vpop.f32.mrf.mxu0
  %v1880 = vadd.f32 %v1791, %v1879
  %v1881 = vpop.f32.mrf.mxu0
  %v1882 = vpop.f32.mrf.mxu0
  %v1883 = vadd.f32 %v1791, %v1882
  %v1884 = vpop.f32.mrf.mxu0
  %1885 = vmatprep.mubr.bf16.mxu0 0
  %1886 = vmatmul.mubr.bf16.gmra.mxu0 %v1815
  %v1887 = vpop.f32.mrf.mxu0
  %v1888 = vadd.f32 %v1791, %v1887
  %v1889 = vpop.f32.mrf.mxu0
  %v1890 = vpop.f32.mrf.mxu0
  %v1891 = vadd.f32 %v1791, %v1890
  %v1892 = vpop.f32.mrf.mxu0
  %1893 = vmatprep.mubr.bf16.mxu0 0
  %1894 = vmatmul.mubr.bf16.gmra.mxu0 %v1818
  %v1895 = vpop.f32.mrf.mxu0
  %v1896 = vadd.f32 %v1791, %v1895
  %v1897 = vpop.f32.mrf.mxu0
  %v1898 = vpop.f32.mrf.mxu0
  %v1899 = vadd.f32 %v1791, %v1898
  %v1900 = vpop.f32.mrf.mxu0
  %1901 = vmatprep.mubr.bf16.mxu0 0
  %1902 = vmatmul.mubr.bf16.gmra.mxu0 %v1821
  %v1903 = vpop.f32.mrf.mxu0
  %v1904 = vadd.f32 %v1791, %v1903
  %v1905 = vpop.f32.mrf.mxu0
  %v1906 = vpop.f32.mrf.mxu0
  %v1907 = vadd.f32 %v1791, %v1906
  %v1908 = vpop.f32.mrf.mxu0
  %1909 = vmatprep.mubr.bf16.mxu0 0
  %1910 = vmatmul.mubr.bf16.gmra.mxu0 %v1824
  %v1911 = vpop.f32.mrf.mxu0
  %v1912 = vadd.f32 %v1791, %v1911
  %v1913 = vpop.f32.mrf.mxu0
  %v1914 = vpop.f32.mrf.mxu0
  %v1915 = vadd.f32 %v1791, %v1914
  %v1916 = vpop.f32.mrf.mxu0
  %1917 = vmatprep.mubr.bf16.mxu0 0
  %1918 = vmatmul.mubr.bf16.gmra.mxu0 %v1827
  %v1919 = vpop.f32.mrf.mxu0
  %v1920 = vadd.f32 %v1791, %v1919
  %v1921 = vpop.f32.mrf.mxu0
  %v1922 = vpop.f32.mrf.mxu0
  %v1923 = vadd.f32 %v1791, %v1922
  %v1924 = vpop.f32.mrf.mxu0
  %1925 = vdwg.mxu0
  %1926 = vst.msk [vmem:[%s7] sm:$0xff] %vm43, %v1864
  %1927 = vst.msk [vmem:[%s7 + $0x8] sm:$0xff] %vm43, %v1867
  %1928 = vst.msk [vmem:[%s7 + $0x10] sm:$0xff] %vm43, %v1872
  %1929 = vst.msk [vmem:[%s7 + $0x18] sm:$0xff] %vm43, %v1875
  %1930 = vst.msk [vmem:[%s7 + $0x20] sm:$0xff] %vm43, %v1880
  %1931 = vst.msk [vmem:[%s7 + $0x28] sm:$0xff] %vm43, %v1883
  %1932 = vst.msk [vmem:[%s7 + $0x30] sm:$0xff] %vm43, %v1888
  %1933 = vst.msk [vmem:[%s7 + $0x38] sm:$0xff] %vm43, %v1891
  %1934 = vst.msk [vmem:[%s7 + $0x40] sm:$0xff] %vm43, %v1896
  %1935 = vst.msk [vmem:[%s7 + $0x48] sm:$0xff] %vm43, %v1899
  %1936 = vst.msk [vmem:[%s7 + $0x50] sm:$0xff] %vm43, %v1904
  %1937 = vst.msk [vmem:[%s7 + $0x58] sm:$0xff] %vm43, %v1907
  %1938 = vst.msk [vmem:[%s7 + $0x60] sm:$0xff] %vm43, %v1912
  %1939 = vst.msk [vmem:[%s7 + $0x68] sm:$0xff] %vm43, %v1915
  %1940 = vst.msk [vmem:[%s7 + $0x70] sm:$0xff] %vm43, %v1920
  %1941 = vst.msk [vmem:[%s7 + $0x78] sm:$0xff] %vm43, %v1923
  // Predicated region
  $region30: #{tpu_custom_call.1} parent=0 // pred_check
    _
  $region31: #{tpu_custom_call.1} parent=0 // pred_check_branch
    %1943 = sbr.rel (0) target = $region33
  $region32: #{tpu_custom_call.1} parent=0 // pred_region
    _
  $region33: #{tpu_custom_call.1} parent=0 // pred_fallthru
    _
  // Predicated region
  $region34: #{tpu_custom_call.1} parent=0 // pred_check
    _
  $region35: #{tpu_custom_call.1} parent=0 // pred_check_branch
    %1945 = sbr.rel (0) target = $region37
  $region36: #{tpu_custom_call.1} parent=0 // pred_region
    _
  $region37: #{tpu_custom_call.1} parent=0 // pred_fallthru
    _

</llo_original>
